<compile_context>
chip_gen: v6e
topology: v6e:2x2x1
jax: 0.10.0
libtpu: 0.0.40
codegen_flags: <defaults>
</compile_context>

<pallas_src>
import functools

import jax
import jax.numpy as jnp
from jax import lax
from jax.experimental import pallas as pl
from jax.experimental.pallas import tpu as pltpu

EPS = 1e-5


def _resblock_kernel(
    xa_ref,                  # (1, S*C_in, TL)   phase-decomposed input, tile t
    xh_ref,                  # (1, S*C_in, 128)  right halo: next 128 columns of the same
    s1_ref, sh1_ref,         # (S*C_in, 1)       BN1 scale / shift per (phase, channel) row
    w1_ref, b1_ref,          # (K, C_out, C_in)  [BN2 folded in], (C_out, 1)
    w2_ref, b2_ref,          # (K, C_out, C_out), (C_out, 1)
    out_ref,                 # (1, C_out, TL)    ragged last tile handled by Pallas
    act_ref,                 # VMEM scratch (S*C_in, WIN): BN1+ReLU+masked activations
    *, C_in, C_out, K, stride, n_pad, L, L1,
    TL, TLY, H, WIN, a_min, b_min, pad_l2, roff, in_dt,
):
    t = pl.program_id(1)
    f32 = jnp.float32

    # ---- BN1 (eval) + ReLU + conv1 zero padding, fused into the window build --------
    # Window column w (global a = t*TL + w) of phase p maps to x index
    #   m = (t*TL + w + a_min)*stride + p ;  valid iff 0 <= m < L.
    lo = -a_min - t * TL                                     # same bound for every phase
    col_a = lax.broadcasted_iota(jnp.int32, (1, TL), 1)
    col_b = (lax.broadcasted_iota(jnp.int32, (1, H), 1) + TL) if H > 0 else None
    for p in range(stride):
        r0, r1 = p * C_in, (p + 1) * C_in
        sc, sh = s1_ref[r0:r1, :], sh1_ref[r0:r1, :]
        hi_p = (L - 1 - p) // stride + 1 - a_min - t * TL
        act_a = jnp.maximum(xa_ref[0, r0:r1, :].astype(f32) * sc + sh, 0.0)
        act_a = jnp.where(jnp.logical_and(col_a >= lo, col_a < hi_p), act_a, 0.0)
        act_ref[r0:r1, :TL] = act_a.astype(in_dt)
        if H > 0:
            act_b = jnp.maximum(xh_ref[0, r0:r1, :H].astype(f32) * sc + sh, 0.0)
            act_b = jnp.where(jnp.logical_and(col_b >= lo, col_b < hi_p), act_b, 0.0)
            act_ref[r0:r1, TL:WIN] = act_b.astype(in_dt)

    # ---- Conv1d #1 (stride, padding=n_pad) with BN2 folded: K accumulated MXU matmuls
    y = None
    for k in range(K):
        p_k = (k - n_pad) % stride
        off = (k - n_pad) // stride - b_min                  # >= 0 by construction
        a_k = act_ref[p_k * C_in:(p_k + 1) * C_in, off:off + TLY]
        d = jnp.dot(w1_ref[k], a_k, preferred_element_type=f32)
        y = d if y is None else y + d
    y = y + b1_ref[...]                                      # (C_out, TLY) f32

    # ---- ReLU #2 + conv2's 'same' zero padding (dropout = identity in eval mode) ----
    col_y = lax.broadcasted_iota(jnp.int32, (1, TLY), 1)
    lo2 = pad_l2 - t * TL
    hi2 = L1 + pad_l2 - t * TL
    h2 = jnp.where(jnp.logical_and(col_y >= lo2, col_y < hi2),
                   jnp.maximum(y, 0.0), 0.0).astype(in_dt)

    # ---- Conv1d #2 (stride 1, 'same'): K accumulated MXU matmuls on register slices --
    acc = None
    for k in range(K):
        d = jnp.dot(w2_ref[k], h2[:, k:k + TL], preferred_element_type=f32)
        acc = d if acc is None else acc + d
    out = acc + b2_ref[...]                                  # (C_out, TL) f32

    # ---- residual (raw x; MaxPool1d(stride) == max over the stride phases) -----------
    # Residual column i comes from window column roff + i; the last roff columns live in
    # the halo block, so the output is written in two lane ranges (no concat needed).
    w_a = TL - roff
    if w_a > 0:
        res = xa_ref[0, 0:C_in, roff:TL].astype(f32)
        for p in range(1, stride):
            res = jnp.maximum(res, xa_ref[0, p * C_in:(p + 1) * C_in, roff:TL].astype(f32))
        out_ref[0, :, :w_a] = out[:, :w_a] + res
    if roff > 0:
        res = xh_ref[0, 0:C_in, :roff].astype(f32)
        for p in range(1, stride):
            res = jnp.maximum(res, xh_ref[0, p * C_in:(p + 1) * C_in, :roff].astype(f32))
        out_ref[0, :, w_a:] = out[:, w_a:] + res


def resblock_forward(x_ncl, params, *, kernel_size, stride, n_pad,
                     block_l=None, use_bf16=True):
    """Eval-mode ResBlock forward. x_ncl: (N, C_in, L) float32. Returns (N, C_out, L1) f32."""
    N, C_in, L = x_ncl.shape
    K, s = int(kernel_size), int(stride)
    w1 = jnp.asarray(params["conv1_w"], jnp.float32)         # (C_out, C_in, K)
    w2 = jnp.asarray(params["conv2_w"], jnp.float32)         # (C_out, C_out, K)
    C_out = w1.shape[0]
    L1 = (L + 2 * n_pad - K) // s + 1                         # conv1 (== conv2) output length

    pool = (C_out, L1) != (C_in, L)                           # PyTorch `if out.shape != x.shape`
    if pool:
        assert C_out == C_in and L1 == L // s, "residual shapes must match after MaxPool1d"
    else:
        assert s == 1, "shape-preserving ResBlock requires stride == 1"

    pad_l2 = (K - 1) // 2                                     # conv2 'same' left pad (odd K)
    # stride-phase bookkeeping: x index m = q*s - n_pad + k = (q + b_k)*s + p_k
    b_min = (-n_pad) // s
    b_max = (K - 1 - n_pad) // s
    a_min = -pad_l2 + b_min
    roff = pad_l2 - b_min                                     # residual offset in the window
    H = max(b_max - b_min + K - 1, roff)                      # halo columns actually needed
    assert 0 <= H <= 128 and 0 <= roff <= 128, "kernel/padding too large for 128-lane halo"

    # L-tile of outputs per grid step (lane axis => multiple of 128); default up to 1024
    TL = int(block_l) if block_l is not None else min(1024, 128 * (-(-L1 // 128)))
    assert TL % 128 == 0 and TL >= 128
    T = -(-L1 // TL)                                          # number of (ragged) L-tiles
    TLY = TL + K - 1                                          # conv1 outputs needed per tile
    WIN = TL + H                                              # activation-window width

    A = T * TL + 128                                          # phase-array length incl. halo
    ZL = roff * s
    ZR = A * s - ZL - L
    assert ZL >= 0 and ZR >= 0

    in_dt = jnp.bfloat16 if use_bf16 else jnp.float32

    # phase-decomposed, shifted, zero-padded input: xph[n, p*C+c, a] = x[n, c, (a+a_min)*s + p]
    xpad = jnp.pad(jnp.asarray(x_ncl, in_dt), ((0, 0), (0, 0), (ZL, ZR)))
    if s == 1:
        xph = xpad                                            # decomposition is the identity
    else:
        xph = (xpad.reshape(N, C_in, A, s).transpose(0, 3, 1, 2).reshape(N, s * C_in, A))

    def f32p(name):
        return jnp.asarray(params[name], jnp.float32)

    # BN1 affine (eval mode, running stats), tiled over the stride phases
    scale1 = f32p("bn1_gamma") * lax.rsqrt(f32p("bn1_var") + EPS)
    shift1 = f32p("bn1_beta") - f32p("bn1_mean") * scale1
    s1 = jnp.tile(scale1, (s,)).reshape(s * C_in, 1)
    sh1 = jnp.tile(shift1, (s,)).reshape(s * C_in, 1)

    # BN2 (eval) folded into conv1 weights / bias
    scale2 = f32p("bn2_gamma") * lax.rsqrt(f32p("bn2_var") + EPS)
    shift2 = f32p("bn2_beta") - f32p("bn2_mean") * scale2
    w1f = (jnp.transpose(w1, (2, 0, 1)) * scale2[None, :, None]).astype(in_dt)  # (K,C_out,C_in)
    b1f = (scale2 * f32p("conv1_b") + shift2).reshape(C_out, 1)
    w2f = jnp.transpose(w2, (2, 0, 1)).astype(in_dt)                            # (K,C_out,C_out)
    b2f = f32p("conv2_b").reshape(C_out, 1)

    kern = functools.partial(
        _resblock_kernel,
        C_in=C_in, C_out=C_out, K=K, stride=s, n_pad=n_pad, L=L, L1=L1,
        TL=TL, TLY=TLY, H=H, WIN=WIN, a_min=a_min, b_min=b_min,
        pad_l2=pad_l2, roff=roff, in_dt=in_dt,
    )

    def const_spec(arr):                                      # small resident params
        return pl.BlockSpec(arr.shape, lambda n, t, _nd=arr.ndim: (0,) * _nd)

    TB = TL // 128
    isz = jnp.dtype(in_dt).itemsize
    est = (2 * s * C_in * TL * isz + 2 * s * C_in * 128 * isz     # double-buffered inputs
           + 2 * C_out * TL * 4                                   # double-buffered output
           + s * C_in * WIN * isz                                 # act scratch
           + 2 * (w1f.size + w2f.size) * isz
           + 2 * (s1.size + sh1.size + b1f.size + b2f.size) * 4)
    vmem_limit = int(min(max(32 << 20, 2 * est + (8 << 20)), 100 << 20))

    return pl.pallas_call(
        kern,
        out_shape=jax.ShapeDtypeStruct((N, C_out, L1), jnp.float32),
        grid=(N, T),
        in_specs=[
            pl.BlockSpec((1, s * C_in, TL), lambda n, t: (n, 0, t)),            # tile t
            pl.BlockSpec((1, s * C_in, 128), lambda n, t: (n, 0, (t + 1) * TB)),  # 128-lane halo
            const_spec(s1), const_spec(sh1),
            const_spec(w1f), const_spec(b1f),
            const_spec(w2f), const_spec(b2f),
        ],
        out_specs=pl.BlockSpec((1, C_out, TL), lambda n, t: (n, 0, t)),
        scratch_shapes=[pltpu.VMEM((s * C_in, WIN), in_dt)],
        compiler_params=pltpu.CompilerParams(
            dimension_semantics=("parallel", "parallel"),
            vmem_limit_bytes=vmem_limit),
    )(xph, xph, s1, sh1, w1f, b1f, w2f, b2f)


def resblock_reference(x_ncl, params, *, kernel_size, stride, n_pad):
    """Pure-JAX reference (eval-mode), NCL layout, for correctness checking."""
    K = kernel_size

    def bn(v, g, b, m, var):
        return (v - m[None, :, None]) * (g[None, :, None] /
                jnp.sqrt(var[None, :, None] + EPS)) + b[None, :, None]

    dn = ("NCH", "OIH", "NCH")
    h = jax.nn.relu(bn(x_ncl, params["bn1_gamma"], params["bn1_beta"],
                       params["bn1_mean"], params["bn1_var"]))
    y = lax.conv_general_dilated(h, params["conv1_w"], (stride,),
                                 [(n_pad, n_pad)], dimension_numbers=dn)
    y = y + params["conv1_b"][None, :, None]
    h2 = jax.nn.relu(bn(y, params["bn2_gamma"], params["bn2_beta"],
                        params["bn2_mean"], params["bn2_var"]))
    left = (K - 1) // 2
    right = (K - 1) - left
    y2 = lax.conv_general_dilated(h2, params["conv2_w"], (1,),
                                  [(left, right)], dimension_numbers=dn)
    y2 = y2 + params["conv2_b"][None, :, None]
    if y2.shape != x_ncl.shape:
        N, C, L = x_ncl.shape
        Lp = L // stride
        xr = x_ncl[:, :, :stride * Lp].reshape(N, C, Lp, stride).max(axis=3)
    else:
        xr = x_ncl
    return y2 + xr


def _check(name, out, ref, rtol):
    assert out.shape == ref.shape, (name, out.shape, ref.shape)
    err = float(jnp.max(jnp.abs(out.astype(jnp.float32) - ref)))
    bound = rtol * max(1.0, float(jnp.max(jnp.abs(ref))))
    assert err <= bound, f"{name}: max abs error {err} > {bound}"


if __name__ == "__main__":
    key = jax.random.PRNGKey(0)

    def make_params(k, C_in, C_out, K):
        ks = jax.random.split(k, 12)
        return {
            "bn1_gamma": jax.random.uniform(ks[0], (C_in,), jnp.float32, 0.5, 1.5),
            "bn1_beta":  0.1 * jax.random.normal(ks[1], (C_in,), jnp.float32),
            "bn1_mean":  0.1 * jax.random.normal(ks[2], (C_in,), jnp.float32),
            "bn1_var":   jax.random.uniform(ks[3], (C_in,), jnp.float32, 0.5, 1.5),
            "conv1_w":   0.2 * jax.random.normal(ks[4], (C_out, C_in, K), jnp.float32),
            "conv1_b":   0.1 * jax.random.normal(ks[5], (C_out,), jnp.float32),
            "bn2_gamma": jax.random.uniform(ks[6], (C_out,), jnp.float32, 0.5, 1.5),
            "bn2_beta":  0.1 * jax.random.normal(ks[7], (C_out,), jnp.float32),
            "bn2_mean":  0.1 * jax.random.normal(ks[8], (C_out,), jnp.float32),
            "bn2_var":   jax.random.uniform(ks[9], (C_out,), jnp.float32, 0.5, 1.5),
            "conv2_w":   0.2 * jax.random.normal(ks[10], (C_out, C_out, K), jnp.float32),
            "conv2_b":   0.1 * jax.random.normal(ks[11], (C_out,), jnp.float32),
        }

    kA, kB, kC, kxA, kxB, kxC = jax.random.split(key, 6)

    # --- config A: down-sampling block (stride 2 -> MaxPool1d residual), f32 + bf16 ---
    N, C, L, K = 2, 4, 16, 3
    pA = make_params(kA, C, C, K)
    xA = jax.random.normal(kxA, (N, C, L), jnp.float32)
    refA = resblock_reference(xA, pA, kernel_size=K, stride=2, n_pad=1)
    outA = jax.block_until_ready(
        resblock_forward(xA, pA, kernel_size=K, stride=2, n_pad=1, use_bf16=False))
    _check("stride2-f32", outA, refA, 2e-4)
    outA16 = jax.block_until_ready(
        resblock_forward(xA, pA, kernel_size=K, stride=2, n_pad=1))
    _check("stride2-bf16", outA16, refA, 5e-2)

    # --- config B: shape-preserving block (stride 1 -> identity residual), f32 --------
    pB = make_params(kB, C, C, K)
    xB = jax.random.normal(kxB, (N, C, L), jnp.float32)
    refB = resblock_reference(xB, pB, kernel_size=K, stride=1, n_pad=1)
    outB = jax.block_until_ready(
        resblock_forward(xB, pB, kernel_size=K, stride=1, n_pad=1, use_bf16=False))
    _check("stride1-f32", outB, refB, 2e-4)

    # --- config C: multi-tile grid with ragged last tile (L1=300, TL=128 -> T=3) ------
    C2, L2, K2 = 8, 600, 5
    pC = make_params(kC, C2, C2, K2)
    xC = jax.random.normal(kxC, (N, C2, L2), jnp.float32)
    refC = resblock_reference(xC, pC, kernel_size=K2, stride=2, n_pad=2)
    outC = jax.block_until_ready(
        resblock_forward(xC, pC, kernel_size=K2, stride=2, n_pad=2,
                         use_bf16=False, block_l=128))
    _check("multitile-f32", outC, refC, 2e-4)
    outC16 = jax.block_until_ready(
        resblock_forward(xC, pC, kernel_size=K2, stride=2, n_pad=2, block_l=128))
    _check("multitile-bf16", outC16, refC, 5e-2)

    print("KERNEL_OK")
</pallas_src>

<mosaic_0001>
module attributes {stable_mosaic.version = 11 : i64} {
  func.func @_resblock_kernel(%arg0: i32, %arg1: i32, %arg2: memref<1x8x128xf32, #tpu.memory_space<vmem>>, %arg3: memref<1x8x128xf32, #tpu.memory_space<vmem>>, %arg4: memref<8x1xf32, #tpu.memory_space<vmem>>, %arg5: memref<8x1xf32, #tpu.memory_space<vmem>>, %arg6: memref<3x4x4xf32, #tpu.memory_space<vmem>>, %arg7: memref<4x1xf32, #tpu.memory_space<vmem>>, %arg8: memref<3x4x4xf32, #tpu.memory_space<vmem>>, %arg9: memref<4x1xf32, #tpu.memory_space<vmem>>, %arg10: memref<1x4x128xf32, #tpu.memory_space<vmem>>, %arg11: memref<8x131xf32, #tpu.memory_space<vmem>>) attributes {dimension_semantics = [#tpu.dimension_semantics<parallel>, #tpu.dimension_semantics<parallel>], iteration_bounds = array<i64: 2, 1>, scalar_prefetch = 0 : i64, scratch_operands = 1 : i64, tpu.core_type = #tpu.core_type<tc>, window_params = [{transform_indices = @transform_0, window_bounds = array<i64: 1, 8, 128>}, {transform_indices = @transform_1, window_bounds = array<i64: 1, 8, 128>}, {pipeline_mode = #tpu.pipeline_mode<synchronous>, transform_indices = @transform_2, window_bounds = array<i64: 8, 1>}, {pipeline_mode = #tpu.pipeline_mode<synchronous>, transform_indices = @transform_3, window_bounds = array<i64: 8, 1>}, {pipeline_mode = #tpu.pipeline_mode<synchronous>, transform_indices = @transform_4, window_bounds = array<i64: 3, 4, 4>}, {pipeline_mode = #tpu.pipeline_mode<synchronous>, transform_indices = @transform_5, window_bounds = array<i64: 4, 1>}, {pipeline_mode = #tpu.pipeline_mode<synchronous>, transform_indices = @transform_6, window_bounds = array<i64: 3, 4, 4>}, {pipeline_mode = #tpu.pipeline_mode<synchronous>, transform_indices = @transform_7, window_bounds = array<i64: 4, 1>}, {transform_indices = @transform_8, window_bounds = array<i64: 1, 4, 128>}]} {
    %c128_i32 = arith.constant 128 : i32
    %0 = arith.muli %arg1, %c128_i32 : i32
    %c2_i32 = arith.constant 2 : i32
    %1 = arith.subi %c2_i32, %0 : i32
    %2 = tpu.iota {dimensions = array<i32: 1>} : vector<1x128xi32>
    %3 = tpu.iota {dimensions = array<i32: 1>} : vector<1x3xi32>
    %c128_i32_0 = arith.constant 128 : i32
    %4 = vector.broadcast %c128_i32_0 : i32 to vector<1x3xi32>
    %5 = arith.addi %3, %4 : vector<1x3xi32>
    %c0 = arith.constant 0 : index
    %c0_1 = arith.constant 0 : index
    %6 = vector.load %arg4[%c0, %c0_1] : memref<8x1xf32, #tpu.memory_space<vmem>>, vector<4x1xf32>
    %c0_2 = arith.constant 0 : index
    %c0_3 = arith.constant 0 : index
    %7 = vector.load %arg5[%c0_2, %c0_3] : memref<8x1xf32, #tpu.memory_space<vmem>>, vector<4x1xf32>
    %c128_i32_4 = arith.constant 128 : i32
    %8 = arith.muli %arg1, %c128_i32_4 : i32
    %c10_i32 = arith.constant 10 : i32
    %9 = arith.subi %c10_i32, %8 : i32
    %c0_5 = arith.constant 0 : index
    %c0_6 = arith.constant 0 : index
    %c0_7 = arith.constant 0 : index
    %10 = vector.load %arg2[%c0_5, %c0_6, %c0_7] : memref<1x8x128xf32, #tpu.memory_space<vmem>>, vector<1x4x128xf32>
    %11 = vector.shape_cast %10 : vector<1x4x128xf32> to vector<4x128xf32>
    %12 = vector.broadcast %6 : vector<4x1xf32> to vector<4x128xf32>
    %13 = arith.mulf %11, %12 : vector<4x128xf32>
    %14 = vector.broadcast %7 : vector<4x1xf32> to vector<4x128xf32>
    %15 = arith.addf %13, %14 : vector<4x128xf32>
    %cst = arith.constant 0.000000e+00 : f32
    %16 = vector.broadcast %cst : f32 to vector<4x128xf32>
    %17 = arith.maximumf %15, %16 : vector<4x128xf32>
    %18 = vector.broadcast %1 : i32 to vector<1x128xi32>
    %19 = arith.cmpi sge, %2, %18 : vector<1x128xi32>
    %20 = vector.broadcast %9 : i32 to vector<1x128xi32>
    %21 = arith.cmpi slt, %2, %20 : vector<1x128xi32>
    %22 = arith.andi %19, %21 : vector<1x128xi1>
    %cst_8 = arith.constant 0.000000e+00 : f32
    %23 = vector.shape_cast %22 : vector<1x128xi1> to vector<1x128xi1>
    %24 = vector.broadcast %23 : vector<1x128xi1> to vector<4x128xi1>
    %25 = vector.broadcast %cst_8 : f32 to vector<4x128xf32>
    %26 = arith.select %24, %17, %25 : vector<4x128xi1>, vector<4x128xf32>
    %c0_9 = arith.constant 0 : index
    %c0_10 = arith.constant 0 : index
    %27 = vector.load %arg11[%c0_9, %c0_10] : memref<8x131xf32, #tpu.memory_space<vmem>>, vector<4x128xf32>
    tpu.vector_store %arg11[%c0_9, %c0_10], %26 {strides = array<i32>} : memref<8x131xf32, #tpu.memory_space<vmem>>, vector<4x128xf32>,
    %c0_11 = arith.constant 0 : index
    %c0_12 = arith.constant 0 : index
    %c0_13 = arith.constant 0 : index
    %28 = vector.load %arg3[%c0_11, %c0_12, %c0_13] : memref<1x8x128xf32, #tpu.memory_space<vmem>>, vector<1x4x3xf32>
    %29 = vector.shape_cast %28 : vector<1x4x3xf32> to vector<4x3xf32>
    %30 = vector.broadcast %6 : vector<4x1xf32> to vector<4x3xf32>
    %31 = arith.mulf %29, %30 : vector<4x3xf32>
    %32 = vector.broadcast %7 : vector<4x1xf32> to vector<4x3xf32>
    %33 = arith.addf %31, %32 : vector<4x3xf32>
    %cst_14 = arith.constant 0.000000e+00 : f32
    %34 = vector.broadcast %cst_14 : f32 to vector<4x3xf32>
    %35 = arith.maximumf %33, %34 : vector<4x3xf32>
    %36 = vector.broadcast %1 : i32 to vector<1x3xi32>
    %37 = arith.cmpi sge, %5, %36 : vector<1x3xi32>
    %38 = vector.broadcast %9 : i32 to vector<1x3xi32>
    %39 = arith.cmpi slt, %5, %38 : vector<1x3xi32>
    %40 = arith.andi %37, %39 : vector<1x3xi1>
    %cst_15 = arith.constant 0.000000e+00 : f32
    %41 = vector.shape_cast %40 : vector<1x3xi1> to vector<1x3xi1>
    %42 = vector.broadcast %41 : vector<1x3xi1> to vector<4x3xi1>
    %43 = vector.broadcast %cst_15 : f32 to vector<4x3xf32>
    %44 = arith.select %42, %35, %43 : vector<4x3xi1>, vector<4x3xf32>
    %c0_16 = arith.constant 0 : index
    %c128 = arith.constant 128 : index
    %45 = vector.load %arg11[%c0_16, %c128] : memref<8x131xf32, #tpu.memory_space<vmem>>, vector<4x3xf32>
    tpu.vector_store %arg11[%c0_16, %c128], %44 {strides = array<i32>} : memref<8x131xf32, #tpu.memory_space<vmem>>, vector<4x3xf32>,
    %c4 = arith.constant 4 : index
    %c0_17 = arith.constant 0 : index
    %46 = vector.load %arg4[%c4, %c0_17] : memref<8x1xf32, #tpu.memory_space<vmem>>, vector<4x1xf32>
    %c4_18 = arith.constant 4 : index
    %c0_19 = arith.constant 0 : index
    %47 = vector.load %arg5[%c4_18, %c0_19] : memref<8x1xf32, #tpu.memory_space<vmem>>, vector<4x1xf32>
    %c128_i32_20 = arith.constant 128 : i32
    %48 = arith.muli %arg1, %c128_i32_20 : i32
    %c10_i32_21 = arith.constant 10 : i32
    %49 = arith.subi %c10_i32_21, %48 : i32
    %c0_22 = arith.constant 0 : index
    %c4_23 = arith.constant 4 : index
    %c0_24 = arith.constant 0 : index
    %50 = vector.load %arg2[%c0_22, %c4_23, %c0_24] : memref<1x8x128xf32, #tpu.memory_space<vmem>>, vector<1x4x128xf32>
    %51 = vector.shape_cast %50 : vector<1x4x128xf32> to vector<4x128xf32>
    %52 = vector.broadcast %46 : vector<4x1xf32> to vector<4x128xf32>
    %53 = arith.mulf %51, %52 : vector<4x128xf32>
    %54 = vector.broadcast %47 : vector<4x1xf32> to vector<4x128xf32>
    %55 = arith.addf %53, %54 : vector<4x128xf32>
    %cst_25 = arith.constant 0.000000e+00 : f32
    %56 = vector.broadcast %cst_25 : f32 to vector<4x128xf32>
    %57 = arith.maximumf %55, %56 : vector<4x128xf32>
    %58 = vector.broadcast %1 : i32 to vector<1x128xi32>
    %59 = arith.cmpi sge, %2, %58 : vector<1x128xi32>
    %60 = vector.broadcast %49 : i32 to vector<1x128xi32>
    %61 = arith.cmpi slt, %2, %60 : vector<1x128xi32>
    %62 = arith.andi %59, %61 : vector<1x128xi1>
    %cst_26 = arith.constant 0.000000e+00 : f32
    %63 = vector.shape_cast %62 : vector<1x128xi1> to vector<1x128xi1>
    %64 = vector.broadcast %63 : vector<1x128xi1> to vector<4x128xi1>
    %65 = vector.broadcast %cst_26 : f32 to vector<4x128xf32>
    %66 = arith.select %64, %57, %65 : vector<4x128xi1>, vector<4x128xf32>
    %c4_27 = arith.constant 4 : index
    %c0_28 = arith.constant 0 : index
    %67 = vector.load %arg11[%c4_27, %c0_28] : memref<8x131xf32, #tpu.memory_space<vmem>>, vector<4x128xf32>
    tpu.vector_store %arg11[%c4_27, %c0_28], %66 {strides = array<i32>} : memref<8x131xf32, #tpu.memory_space<vmem>>, vector<4x128xf32>,
    %c0_29 = arith.constant 0 : index
    %c4_30 = arith.constant 4 : index
    %c0_31 = arith.constant 0 : index
    %68 = vector.load %arg3[%c0_29, %c4_30, %c0_31] : memref<1x8x128xf32, #tpu.memory_space<vmem>>, vector<1x4x3xf32>
    %69 = vector.shape_cast %68 : vector<1x4x3xf32> to vector<4x3xf32>
    %70 = vector.broadcast %46 : vector<4x1xf32> to vector<4x3xf32>
    %71 = arith.mulf %69, %70 : vector<4x3xf32>
    %72 = vector.broadcast %47 : vector<4x1xf32> to vector<4x3xf32>
    %73 = arith.addf %71, %72 : vector<4x3xf32>
    %cst_32 = arith.constant 0.000000e+00 : f32
    %74 = vector.broadcast %cst_32 : f32 to vector<4x3xf32>
    %75 = arith.maximumf %73, %74 : vector<4x3xf32>
    %76 = vector.broadcast %1 : i32 to vector<1x3xi32>
    %77 = arith.cmpi sge, %5, %76 : vector<1x3xi32>
    %78 = vector.broadcast %49 : i32 to vector<1x3xi32>
    %79 = arith.cmpi slt, %5, %78 : vector<1x3xi32>
    %80 = arith.andi %77, %79 : vector<1x3xi1>
    %cst_33 = arith.constant 0.000000e+00 : f32
    %81 = vector.shape_cast %80 : vector<1x3xi1> to vector<1x3xi1>
    %82 = vector.broadcast %81 : vector<1x3xi1> to vector<4x3xi1>
    %83 = vector.broadcast %cst_33 : f32 to vector<4x3xf32>
    %84 = arith.select %82, %75, %83 : vector<4x3xi1>, vector<4x3xf32>
    %c4_34 = arith.constant 4 : index
    %c128_35 = arith.constant 128 : index
    %85 = vector.load %arg11[%c4_34, %c128_35] : memref<8x131xf32, #tpu.memory_space<vmem>>, vector<4x3xf32>
    tpu.vector_store %arg11[%c4_34, %c128_35], %84 {strides = array<i32>} : memref<8x131xf32, #tpu.memory_space<vmem>>, vector<4x3xf32>,
    %c4_36 = arith.constant 4 : index
    %c0_37 = arith.constant 0 : index
    %86 = vector.load %arg11[%c4_36, %c0_37] : memref<8x131xf32, #tpu.memory_space<vmem>>, vector<4x130xf32>
    %c0_38 = arith.constant 0 : index
    %c0_39 = arith.constant 0 : index
    %c0_40 = arith.constant 0 : index
    %87 = vector.load %arg6[%c0_38, %c0_39, %c0_40] : memref<3x4x4xf32, #tpu.memory_space<vmem>>, vector<1x4x4xf32>
    %88 = vector.shape_cast %87 : vector<1x4x4xf32> to vector<4x4xf32>
    %cst_41 = arith.constant dense<0.000000e+00> : vector<4x130xf32>
    %89 = tpu.matmul %88, %86, %cst_41 {dimension_numbers = #tpu.dot_dimension_numbers<[1], [0], [0], [1], [0, 0, 1, 1], [], []>} : vector<4x4xf32>, vector<4x130xf32>, vector<4x130xf32> -> vector<4x130xf32>
    %c0_42 = arith.constant 0 : index
    %c1 = arith.constant 1 : index
    %90 = vector.load %arg11[%c0_42, %c1] : memref<8x131xf32, #tpu.memory_space<vmem>>, vector<4x130xf32>
    %c1_43 = arith.constant 1 : index
    %c0_44 = arith.constant 0 : index
    %c0_45 = arith.constant 0 : index
    %91 = vector.load %arg6[%c1_43, %c0_44, %c0_45] : memref<3x4x4xf32, #tpu.memory_space<vmem>>, vector<1x4x4xf32>
    %92 = vector.shape_cast %91 : vector<1x4x4xf32> to vector<4x4xf32>
    %cst_46 = arith.constant dense<0.000000e+00> : vector<4x130xf32>
    %93 = tpu.matmul %92, %90, %cst_46 {dimension_numbers = #tpu.dot_dimension_numbers<[1], [0], [0], [1], [0, 0, 1, 1], [], []>} : vector<4x4xf32>, vector<4x130xf32>, vector<4x130xf32> -> vector<4x130xf32>
    %94 = arith.addf %89, %93 : vector<4x130xf32>
    %c4_47 = arith.constant 4 : index
    %c1_48 = arith.constant 1 : index
    %95 = vector.load %arg11[%c4_47, %c1_48] : memref<8x131xf32, #tpu.memory_space<vmem>>, vector<4x130xf32>
    %c2 = arith.constant 2 : index
    %c0_49 = arith.constant 0 : index
    %c0_50 = arith.constant 0 : index
    %96 = vector.load %arg6[%c2, %c0_49, %c0_50] : memref<3x4x4xf32, #tpu.memory_space<vmem>>, vector<1x4x4xf32>
    %97 = vector.shape_cast %96 : vector<1x4x4xf32> to vector<4x4xf32>
    %cst_51 = arith.constant dense<0.000000e+00> : vector<4x130xf32>
    %98 = tpu.matmul %97, %95, %cst_51 {dimension_numbers = #tpu.dot_dimension_numbers<[1], [0], [0], [1], [0, 0, 1, 1], [], []>} : vector<4x4xf32>, vector<4x130xf32>, vector<4x130xf32> -> vector<4x130xf32>
    %99 = arith.addf %94, %98 : vector<4x130xf32>
    %c0_52 = arith.constant 0 : index
    %c0_53 = arith.constant 0 : index
    %100 = vector.load %arg7[%c0_52, %c0_53] : memref<4x1xf32, #tpu.memory_space<vmem>>, vector<4x1xf32>
    %101 = vector.broadcast %100 : vector<4x1xf32> to vector<4x130xf32>
    %102 = arith.addf %99, %101 : vector<4x130xf32>
    %103 = tpu.iota {dimensions = array<i32: 1>} : vector<1x130xi32>
    %c128_i32_54 = arith.constant 128 : i32
    %104 = arith.muli %arg1, %c128_i32_54 : i32
    %c1_i32 = arith.constant 1 : i32
    %105 = arith.subi %c1_i32, %104 : i32
    %c128_i32_55 = arith.constant 128 : i32
    %106 = arith.muli %arg1, %c128_i32_55 : i32
    %c9_i32 = arith.constant 9 : i32
    %107 = arith.subi %c9_i32, %106 : i32
    %108 = vector.broadcast %105 : i32 to vector<1x130xi32>
    %109 = arith.cmpi sge, %103, %108 : vector<1x130xi32>
    %110 = vector.broadcast %107 : i32 to vector<1x130xi32>
    %111 = arith.cmpi slt, %103, %110 : vector<1x130xi32>
    %112 = arith.andi %109, %111 : vector<1x130xi1>
    %cst_56 = arith.constant 0.000000e+00 : f32
    %113 = vector.broadcast %cst_56 : f32 to vector<4x130xf32>
    %114 = arith.maximumf %102, %113 : vector<4x130xf32>
    %cst_57 = arith.constant 0.000000e+00 : f32
    %115 = vector.shape_cast %112 : vector<1x130xi1> to vector<1x130xi1>
    %116 = vector.broadcast %115 : vector<1x130xi1> to vector<4x130xi1>
    %117 = vector.broadcast %cst_57 : f32 to vector<4x130xf32>
    %118 = arith.select %116, %114, %117 : vector<4x130xi1>, vector<4x130xf32>
    %c0_58 = arith.constant 0 : index
    %c0_59 = arith.constant 0 : index
    %c0_60 = arith.constant 0 : index
    %119 = vector.load %arg8[%c0_58, %c0_59, %c0_60] : memref<3x4x4xf32, #tpu.memory_space<vmem>>, vector<1x4x4xf32>
    %120 = vector.shape_cast %119 : vector<1x4x4xf32> to vector<4x4xf32>
    %121 = vector.extract_strided_slice %118 {offsets = [0, 0], sizes = [4, 128], strides = [1, 1]} : vector<4x130xf32> to vector<4x128xf32>
    %cst_61 = arith.constant dense<0.000000e+00> : vector<4x128xf32>
    %122 = tpu.matmul %120, %121, %cst_61 {dimension_numbers = #tpu.dot_dimension_numbers<[1], [0], [0], [1], [0, 0, 1, 1], [], []>} : vector<4x4xf32>, vector<4x128xf32>, vector<4x128xf32> -> vector<4x128xf32>
    %c1_62 = arith.constant 1 : index
    %c0_63 = arith.constant 0 : index
    %c0_64 = arith.constant 0 : index
    %123 = vector.load %arg8[%c1_62, %c0_63, %c0_64] : memref<3x4x4xf32, #tpu.memory_space<vmem>>, vector<1x4x4xf32>
    %124 = vector.shape_cast %123 : vector<1x4x4xf32> to vector<4x4xf32>
    %125 = vector.extract_strided_slice %118 {offsets = [0, 1], sizes = [4, 128], strides = [1, 1]} : vector<4x130xf32> to vector<4x128xf32>
    %cst_65 = arith.constant dense<0.000000e+00> : vector<4x128xf32>
    %126 = tpu.matmul %124, %125, %cst_65 {dimension_numbers = #tpu.dot_dimension_numbers<[1], [0], [0], [1], [0, 0, 1, 1], [], []>} : vector<4x4xf32>, vector<4x128xf32>, vector<4x128xf32> -> vector<4x128xf32>
    %127 = arith.addf %122, %126 : vector<4x128xf32>
    %c2_66 = arith.constant 2 : index
    %c0_67 = arith.constant 0 : index
    %c0_68 = arith.constant 0 : index
    %128 = vector.load %arg8[%c2_66, %c0_67, %c0_68] : memref<3x4x4xf32, #tpu.memory_space<vmem>>, vector<1x4x4xf32>
    %129 = vector.shape_cast %128 : vector<1x4x4xf32> to vector<4x4xf32>
    %130 = vector.extract_strided_slice %118 {offsets = [0, 2], sizes = [4, 128], strides = [1, 1]} : vector<4x130xf32> to vector<4x128xf32>
    %cst_69 = arith.constant dense<0.000000e+00> : vector<4x128xf32>
    %131 = tpu.matmul %129, %130, %cst_69 {dimension_numbers = #tpu.dot_dimension_numbers<[1], [0], [0], [1], [0, 0, 1, 1], [], []>} : vector<4x4xf32>, vector<4x128xf32>, vector<4x128xf32> -> vector<4x128xf32>
    %132 = arith.addf %127, %131 : vector<4x128xf32>
    %c0_70 = arith.constant 0 : index
    %c0_71 = arith.constant 0 : index
    %133 = vector.load %arg9[%c0_70, %c0_71] : memref<4x1xf32, #tpu.memory_space<vmem>>, vector<4x1xf32>
    %134 = vector.broadcast %133 : vector<4x1xf32> to vector<4x128xf32>
    %135 = arith.addf %132, %134 : vector<4x128xf32>
    %c0_72 = arith.constant 0 : index
    %c0_73 = arith.constant 0 : index
    %c2_74 = arith.constant 2 : index
    %136 = vector.load %arg2[%c0_72, %c0_73, %c2_74] : memref<1x8x128xf32, #tpu.memory_space<vmem>>, vector<1x4x126xf32>
    %137 = vector.shape_cast %136 : vector<1x4x126xf32> to vector<4x126xf32>
    %c0_75 = arith.constant 0 : index
    %c4_76 = arith.constant 4 : index
    %c2_77 = arith.constant 2 : index
    %138 = vector.load %arg2[%c0_75, %c4_76, %c2_77] : memref<1x8x128xf32, #tpu.memory_space<vmem>>, vector<1x4x126xf32>
    %139 = vector.shape_cast %138 : vector<1x4x126xf32> to vector<4x126xf32>
    %140 = arith.maximumf %137, %139 : vector<4x126xf32>
    %141 = vector.extract_strided_slice %135 {offsets = [0, 0], sizes = [4, 126], strides = [1, 1]} : vector<4x128xf32> to vector<4x126xf32>
    %142 = arith.addf %141, %140 : vector<4x126xf32>
    %c0_78 = arith.constant 0 : index
    %c0_79 = arith.constant 0 : index
    %c0_80 = arith.constant 0 : index
    %143 = vector.load %arg10[%c0_78, %c0_79, %c0_80] : memref<1x4x128xf32, #tpu.memory_space<vmem>>, vector<1x4x126xf32>
    %144 = vector.shape_cast %143 : vector<1x4x126xf32> to vector<4x126xf32>
    %145 = vector.shape_cast %142 : vector<4x126xf32> to vector<1x4x126xf32>
    tpu.vector_store %arg10[%c0_78, %c0_79, %c0_80], %145 {strides = array<i32>} : memref<1x4x128xf32, #tpu.memory_space<vmem>>, vector<1x4x126xf32>,
    %c0_81 = arith.constant 0 : index
    %c0_82 = arith.constant 0 : index
    %c0_83 = arith.constant 0 : index
    %146 = vector.load %arg3[%c0_81, %c0_82, %c0_83] : memref<1x8x128xf32, #tpu.memory_space<vmem>>, vector<1x4x2xf32>
    %147 = vector.shape_cast %146 : vector<1x4x2xf32> to vector<4x2xf32>
    %c0_84 = arith.constant 0 : index
    %c4_85 = arith.constant 4 : index
    %c0_86 = arith.constant 0 : index
    %148 = vector.load %arg3[%c0_84, %c4_85, %c0_86] : memref<1x8x128xf32, #tpu.memory_space<vmem>>, vector<1x4x2xf32>
    %149 = vector.shape_cast %148 : vector<1x4x2xf32> to vector<4x2xf32>
    %150 = arith.maximumf %147, %149 : vector<4x2xf32>
    %151 = vector.extract_strided_slice %135 {offsets = [0, 126], sizes = [4, 2], strides = [1, 1]} : vector<4x128xf32> to vector<4x2xf32>
    %152 = arith.addf %151, %150 : vector<4x2xf32>
    %c0_87 = arith.constant 0 : index
    %c0_88 = arith.constant 0 : index
    %c126 = arith.constant 126 : index
    %153 = vector.load %arg10[%c0_87, %c0_88, %c126] : memref<1x4x128xf32, #tpu.memory_space<vmem>>, vector<1x4x2xf32>
    %154 = vector.shape_cast %153 : vector<1x4x2xf32> to vector<4x2xf32>
    %155 = vector.shape_cast %152 : vector<4x2xf32> to vector<1x4x2xf32>
    tpu.vector_store %arg10[%c0_87, %c0_88, %c126], %155 {strides = array<i32>} : memref<1x4x128xf32, #tpu.memory_space<vmem>>, vector<1x4x2xf32>,
    return
  }
  func.func @transform_0(%arg0: i32, %arg1: i32) -> (i32, i32, i32) {
    %c0_i32 = arith.constant 0 : i32
    %c0_i32_0 = arith.constant 0 : i32
    return %arg0, %c0_i32, %arg1 : i32, i32, i32
  }
  func.func @transform_1(%arg0: i32, %arg1: i32) -> (i32, i32, i32) {
    %c1_i32 = arith.constant 1 : i32
    %0 = arith.addi %arg1, %c1_i32 : i32
    %c1_i32_0 = arith.constant 1 : i32
    %1 = arith.muli %0, %c1_i32_0 : i32
    %c0_i32 = arith.constant 0 : i32
    %c0_i32_1 = arith.constant 0 : i32
    return %arg0, %c0_i32, %1 : i32, i32, i32
  }
  func.func @transform_2(%arg0: i32, %arg1: i32) -> (i32, i32) {
    %c0_i32 = arith.constant 0 : i32
    %c0_i32_0 = arith.constant 0 : i32
    %c0_i32_1 = arith.constant 0 : i32
    return %c0_i32, %c0_i32_0 : i32, i32
  }
  func.func @transform_3(%arg0: i32, %arg1: i32) -> (i32, i32) {
    %c0_i32 = arith.constant 0 : i32
    %c0_i32_0 = arith.constant 0 : i32
    %c0_i32_1 = arith.constant 0 : i32
    return %c0_i32, %c0_i32_0 : i32, i32
  }
  func.func @transform_4(%arg0: i32, %arg1: i32) -> (i32, i32, i32) {
    %c0_i32 = arith.constant 0 : i32
    %c0_i32_0 = arith.constant 0 : i32
    %c0_i32_1 = arith.constant 0 : i32
    %c0_i32_2 = arith.constant 0 : i32
    return %c0_i32, %c0_i32_0, %c0_i32_1 : i32, i32, i32
  }
  func.func @transform_5(%arg0: i32, %arg1: i32) -> (i32, i32) {
    %c0_i32 = arith.constant 0 : i32
    %c0_i32_0 = arith.constant 0 : i32
    %c0_i32_1 = arith.constant 0 : i32
    return %c0_i32, %c0_i32_0 : i32, i32
  }
  func.func @transform_6(%arg0: i32, %arg1: i32) -> (i32, i32, i32) {
    %c0_i32 = arith.constant 0 : i32
    %c0_i32_0 = arith.constant 0 : i32
    %c0_i32_1 = arith.constant 0 : i32
    %c0_i32_2 = arith.constant 0 : i32
    return %c0_i32, %c0_i32_0, %c0_i32_1 : i32, i32, i32
  }
  func.func @transform_7(%arg0: i32, %arg1: i32) -> (i32, i32) {
    %c0_i32 = arith.constant 0 : i32
    %c0_i32_0 = arith.constant 0 : i32
    %c0_i32_1 = arith.constant 0 : i32
    return %c0_i32, %c0_i32_0 : i32, i32
  }
  func.func @transform_8(%arg0: i32, %arg1: i32) -> (i32, i32, i32) {
    %c0_i32 = arith.constant 0 : i32
    %c0_i32_0 = arith.constant 0 : i32
    return %arg0, %c0_i32, %arg1 : i32, i32, i32
  }
}

</mosaic_0001>

<llo_original>
// kernel: tpu_custom_call.1
$region0: #{tpu_custom_call.1}
  #allocation0 [shape = 'u32[]', space=smem, size = 0x4, offset = 0x4, fixed_abs, tag = 'smem constant byte address 0x4 - core index']
  #allocation1 [shape = 'u32[144,128]{1,0:T(1,128)}', space=vmem, size = 0x12000, scoped, tag = 'internal scratch']
  #allocation2 [shape = 'f32[8,131]{1,0:T(8,128)}', space=vmem, size = 0x2000, scoped, tag = 'scratch operand']
  %s0 = inlined_call_operand.hbm [shape: f32[2,8,256], index: 0, kind: input, shape index: {}]
  %s1 = inlined_call_operand.hbm [shape: f32[2,8,256], index: 1, kind: input, shape index: {}]
  %s2 = inlined_call_operand.vmem [shape: f32[8,1], index: 2, kind: input, shape index: {}]
  %s3 = inlined_call_operand.vmem [shape: f32[8,1], index: 3, kind: input, shape index: {}]
  %s4 = inlined_call_operand.vmem [shape: f32[3,4,4], index: 4, kind: input, shape index: {}]
  %s5 = inlined_call_operand.vmem [shape: f32[4,1], index: 5, kind: input, shape index: {}]
  %s6 = inlined_call_operand.vmem [shape: f32[3,4,4], index: 6, kind: input, shape index: {}]
  %s7 = inlined_call_operand.vmem [shape: f32[4,1], index: 7, kind: input, shape index: {}]
  %s8 = inlined_call_operand.hbm [shape: f32[2,4,8], index: 8, kind: output, shape index: {}]
  %s9 = sld [smem:[#allocation0]]
  $region73: #{tpu_custom_call.1} parent=0
    _
  %s11 = ssub.s32 1, %s9
  %s12 = scalar_select 0, %s11, %s9
  $region1: #{tpu_custom_call.1} parent=0
    #allocation3 [shape = 'u8[8192]{0}', space=vmem, size = 0x2000, scoped, tag = 'input window, operand 0']
    #allocation4 [shape = 's32[2]{0}', space=sflag, size = 0x8, scoped, tag = 'scoped memory for tpu_custom_call.1']
    #allocation5 [shape = 's32[2]{0}', space=sflag, size = 0x8, scoped, tag = 'scoped memory for tpu_custom_call.1']
    #allocation6 [shape = 'u8[8192]{0}', space=vmem, size = 0x2000, scoped, tag = 'input window, operand 1']
    #allocation7 [shape = 's32[2]{0}', space=sflag, size = 0x8, scoped, tag = 'scoped memory for tpu_custom_call.1']
    #allocation8 [shape = 'u8[4096]{0}', space=vmem, size = 0x1000, scoped, tag = 'output window, operand 0']
    %13 = vsyncpa [#allocation4], 0
    %s14 = scalar_lea.sflag [#allocation4], 1
    %15 = vsyncpa %s14, 0
    %16 = vsyncpa [#allocation7], 0
    %s17 = scalar_lea.sflag [#allocation7], 1
    %18 = vsyncpa %s17, 0
    %19 = vsyncpa [#allocation5], 0
    %s20 = scalar_lea.sflag [#allocation5], 1
    %21 = vsyncpa %s20, 0
    loop: start=0, step=1, limit=4
    $region2: #{tpu_custom_call.1} parent=1 // loop_pre_header
      _
    $region3: #{tpu_custom_call.1} parent=1 // loop_header
      %s23 = sphi 0, %s27
      %p24 = scmp.ge.s32.totalorder %s23, 4
      %s30 = sphi 0, %s42
      %s31 = sphi 0, %s38
      %s32 = sphi 0, %s30
      %s33 = sphi 0, %s31
      %s34 = sphi 0, %s32
      %s35 = sphi 0, %s33
      %s47 = sphi 0, %s49
      %s50 = sphi 0, %s47
      %s51 = sphi 0, %s50
      %s67 = sphi 0, %s51
      %s77 = sphi 0, %s79
      %s80 = sphi 0, %s77
      %s81 = sphi 0, %s80
      %s97 = sphi 0, %s81
      %s101 = sphi 0, %s101
      %s103 = sphi 0, %s101
      %s104 = sphi 0, %s103
      %s118 = sphi 0, %s104
      %s122 = sphi 0, %s122
      %s124 = sphi 0, %s122
      %s125 = sphi 0, %s124
      %s139 = sphi 0, %s125
      %s143 = sphi 0, %s143
      %s145 = sphi 0, %s143
      %s146 = sphi 0, %s145
      %s160 = sphi 0, %s146
      %s164 = sphi 0, %s164
      %s166 = sphi 0, %s164
      %s167 = sphi 0, %s166
      %s181 = sphi 0, %s167
      %s185 = sphi 0, %s185
      %s187 = sphi 0, %s185
      %s188 = sphi 0, %s187
      %s202 = sphi 0, %s188
      %s206 = sphi 0, %s206
      %s208 = sphi 0, %s206
      %s209 = sphi 0, %s208
      %s223 = sphi 0, %s209
      %s231 = sphi 0, %s233
      %s234 = sphi 0, %s231
      %s235 = sphi 0, %s234
      %s251 = sphi 0, %s235
    $region4: #{tpu_custom_call.1} parent=1 // loop_header_branch
      %26 = sbr.rel (%p24) target = $region8
    $region5: #{tpu_custom_call.1} parent=1 // loop_body
      %s28 = ssub.s32 %s23, 1
      %s29 = ssub.s32 %s23, 2
      %s36 = sadd.s32 1, %s31
      %p37 = scmp.ge.s32.totalorder %s36, 1
      %s38 = scalar_select %p37, 0, %s36
      %s39 = sadd.s32 1, %s30
      %s40 = scalar_select %p37, %s39, %s30
      %p41 = scmp.ge.s32.totalorder %s40, 2
      %s42 = scalar_select %p41, 0, %s40
      %s43 = ssub.s32 %s30, %s42
      %s44 = ssub.s32 %s31, %s38
      %s45 = sor.u32 %s43, %s44
      %p46 = scmp.eq.s32.totalorder %s45, 0
      %s48 = sadd.s32 %s47, 1
      %s49 = scalar_select %p46, %s47, %s48
      %p52 = pneg %p46
      %p53 = scmp.eq.s32.totalorder %s23, 1
      %p54 = por %p52, %p53
      %p55 = scmp.ne.s32.totalorder %s47, %s50
      %p56 = scmp.eq.s32.totalorder %s23, 0
      %p57 = por %p55, %p56
      %p58 = scmp.ne.s32.totalorder %s47, %s50
      %p59 = scmp.eq.s32.totalorder %s28, 1
      %p60 = por %p58, %p59
      %p61 = scmp.ne.s32.totalorder %s50, %s51
      %p62 = scmp.eq.s32.totalorder %s28, 0
      %p63 = por %p61, %p62
      %p64 = scmp.ne.s32.totalorder %s50, %s51
      %p65 = scmp.eq.s32.totalorder %s29, 1
      %p66 = por %p64, %p65
      %p68 = scmp.ne.s32.totalorder %s51, %s67
      %p69 = scmp.eq.s32.totalorder %s29, 0
      %p70 = por %p68, %p69
      %s71 = sadd.s32 %s31, 1
      %s72 = sadd.s32 %s38, 1
      %s73 = ssub.s32 %s30, %s42
      %s74 = ssub.s32 %s71, %s72
      %s75 = sor.u32 %s73, %s74
      %p76 = scmp.eq.s32.totalorder %s75, 0
      %s78 = sadd.s32 %s77, 1
      %s79 = scalar_select %p76, %s77, %s78
      %p82 = pneg %p76
      %p83 = scmp.eq.s32.totalorder %s23, 1
      %p84 = por %p82, %p83
      %p85 = scmp.ne.s32.totalorder %s77, %s80
      %p86 = scmp.eq.s32.totalorder %s23, 0
      %p87 = por %p85, %p86
      %p88 = scmp.ne.s32.totalorder %s77, %s80
      %p89 = scmp.eq.s32.totalorder %s28, 1
      %p90 = por %p88, %p89
      %p91 = scmp.ne.s32.totalorder %s80, %s81
      %p92 = scmp.eq.s32.totalorder %s28, 0
      %p93 = por %p91, %p92
      %p94 = scmp.ne.s32.totalorder %s80, %s81
      %p95 = scmp.eq.s32.totalorder %s29, 1
      %p96 = por %p94, %p95
      %p98 = scmp.ne.s32.totalorder %s81, %s97
      %p99 = scmp.eq.s32.totalorder %s29, 0
      %p100 = por %p98, %p99
      %s102 = sadd.s32 %s101, 1
      %p105 = scmp.eq.s32.totalorder %s23, 1
      %p106 = scmp.ne.s32.totalorder %s101, %s103
      %p107 = scmp.eq.s32.totalorder %s23, 0
      %p108 = por %p106, %p107
      %p109 = scmp.ne.s32.totalorder %s101, %s103
      %p110 = scmp.eq.s32.totalorder %s28, 1
      %p111 = por %p109, %p110
      %p112 = scmp.ne.s32.totalorder %s103, %s104
      %p113 = scmp.eq.s32.totalorder %s28, 0
      %p114 = por %p112, %p113
      %p115 = scmp.ne.s32.totalorder %s103, %s104
      %p116 = scmp.eq.s32.totalorder %s29, 1
      %p117 = por %p115, %p116
      %p119 = scmp.ne.s32.totalorder %s104, %s118
      %p120 = scmp.eq.s32.totalorder %s29, 0
      %p121 = por %p119, %p120
      %s123 = sadd.s32 %s122, 1
      %p126 = scmp.eq.s32.totalorder %s23, 1
      %p127 = scmp.ne.s32.totalorder %s122, %s124
      %p128 = scmp.eq.s32.totalorder %s23, 0
      %p129 = por %p127, %p128
      %p130 = scmp.ne.s32.totalorder %s122, %s124
      %p131 = scmp.eq.s32.totalorder %s28, 1
      %p132 = por %p130, %p131
      %p133 = scmp.ne.s32.totalorder %s124, %s125
      %p134 = scmp.eq.s32.totalorder %s28, 0
      %p135 = por %p133, %p134
      %p136 = scmp.ne.s32.totalorder %s124, %s125
      %p137 = scmp.eq.s32.totalorder %s29, 1
      %p138 = por %p136, %p137
      %p140 = scmp.ne.s32.totalorder %s125, %s139
      %p141 = scmp.eq.s32.totalorder %s29, 0
      %p142 = por %p140, %p141
      %s144 = sadd.s32 %s143, 1
      %p147 = scmp.eq.s32.totalorder %s23, 1
      %p148 = scmp.ne.s32.totalorder %s143, %s145
      %p149 = scmp.eq.s32.totalorder %s23, 0
      %p150 = por %p148, %p149
      %p151 = scmp.ne.s32.totalorder %s143, %s145
      %p152 = scmp.eq.s32.totalorder %s28, 1
      %p153 = por %p151, %p152
      %p154 = scmp.ne.s32.totalorder %s145, %s146
      %p155 = scmp.eq.s32.totalorder %s28, 0
      %p156 = por %p154, %p155
      %p157 = scmp.ne.s32.totalorder %s145, %s146
      %p158 = scmp.eq.s32.totalorder %s29, 1
      %p159 = por %p157, %p158
      %p161 = scmp.ne.s32.totalorder %s146, %s160
      %p162 = scmp.eq.s32.totalorder %s29, 0
      %p163 = por %p161, %p162
      %s165 = sadd.s32 %s164, 1
      %p168 = scmp.eq.s32.totalorder %s23, 1
      %p169 = scmp.ne.s32.totalorder %s164, %s166
      %p170 = scmp.eq.s32.totalorder %s23, 0
      %p171 = por %p169, %p170
      %p172 = scmp.ne.s32.totalorder %s164, %s166
      %p173 = scmp.eq.s32.totalorder %s28, 1
      %p174 = por %p172, %p173
      %p175 = scmp.ne.s32.totalorder %s166, %s167
      %p176 = scmp.eq.s32.totalorder %s28, 0
      %p177 = por %p175, %p176
      %p178 = scmp.ne.s32.totalorder %s166, %s167
      %p179 = scmp.eq.s32.totalorder %s29, 1
      %p180 = por %p178, %p179
      %p182 = scmp.ne.s32.totalorder %s167, %s181
      %p183 = scmp.eq.s32.totalorder %s29, 0
      %p184 = por %p182, %p183
      %s186 = sadd.s32 %s185, 1
      %p189 = scmp.eq.s32.totalorder %s23, 1
      %p190 = scmp.ne.s32.totalorder %s185, %s187
      %p191 = scmp.eq.s32.totalorder %s23, 0
      %p192 = por %p190, %p191
      %p193 = scmp.ne.s32.totalorder %s185, %s187
      %p194 = scmp.eq.s32.totalorder %s28, 1
      %p195 = por %p193, %p194
      %p196 = scmp.ne.s32.totalorder %s187, %s188
      %p197 = scmp.eq.s32.totalorder %s28, 0
      %p198 = por %p196, %p197
      %p199 = scmp.ne.s32.totalorder %s187, %s188
      %p200 = scmp.eq.s32.totalorder %s29, 1
      %p201 = por %p199, %p200
      %p203 = scmp.ne.s32.totalorder %s188, %s202
      %p204 = scmp.eq.s32.totalorder %s29, 0
      %p205 = por %p203, %p204
      %s207 = sadd.s32 %s206, 1
      %p210 = scmp.eq.s32.totalorder %s23, 1
      %p211 = scmp.ne.s32.totalorder %s206, %s208
      %p212 = scmp.eq.s32.totalorder %s23, 0
      %p213 = por %p211, %p212
      %p214 = scmp.ne.s32.totalorder %s206, %s208
      %p215 = scmp.eq.s32.totalorder %s28, 1
      %p216 = por %p214, %p215
      %p217 = scmp.ne.s32.totalorder %s208, %s209
      %p218 = scmp.eq.s32.totalorder %s28, 0
      %p219 = por %p217, %p218
      %p220 = scmp.ne.s32.totalorder %s208, %s209
      %p221 = scmp.eq.s32.totalorder %s29, 1
      %p222 = por %p220, %p221
      %p224 = scmp.ne.s32.totalorder %s209, %s223
      %p225 = scmp.eq.s32.totalorder %s29, 0
      %p226 = por %p224, %p225
      %s227 = ssub.s32 %s30, %s42
      %s228 = ssub.s32 %s31, %s38
      %s229 = sor.u32 %s227, %s228
      %p230 = scmp.eq.s32.totalorder %s229, 0
      %s232 = sadd.s32 %s231, 1
      %s233 = scalar_select %p230, %s231, %s232
      %p236 = pneg %p230
      %p237 = scmp.eq.s32.totalorder %s23, 1
      %p238 = por %p236, %p237
      %p239 = scmp.ne.s32.totalorder %s231, %s234
      %p240 = scmp.eq.s32.totalorder %s23, 0
      %p241 = por %p239, %p240
      %p242 = scmp.ne.s32.totalorder %s231, %s234
      %p243 = scmp.eq.s32.totalorder %s28, 1
      %p244 = por %p242, %p243
      %p245 = scmp.ne.s32.totalorder %s234, %s235
      %p246 = scmp.eq.s32.totalorder %s28, 0
      %p247 = por %p245, %p246
      %p248 = scmp.ne.s32.totalorder %s234, %s235
      %p249 = scmp.eq.s32.totalorder %s29, 1
      %p250 = por %p248, %p249
      %p252 = scmp.ne.s32.totalorder %s235, %s251
      %p253 = scmp.eq.s32.totalorder %s29, 0
      %p254 = por %p252, %p253
      %p255 = scmp.le.s32.totalorder 1, %s23
      %p256 = scmp.lt.s32.totalorder %s23, 3
      %p257 = pnand %p255, %p256
      %p258 = pneg %p257
      // Predicated region
      $region9: #{tpu_custom_call.1} parent=5 // pred_check
        _
      $region10: #{tpu_custom_call.1} parent=5 // pred_check_branch
        %260 = sbr.rel (%p257) target = $region12
      $region11: #{tpu_custom_call.1} parent=5 // pred_region
        %s261 = ssub.s32 %s23, 1
        // Predicated region
        $region13: #{tpu_custom_call.1} parent=11 // pred_check
          %p262 = pneg %p114
        $region14: #{tpu_custom_call.1} parent=11 // pred_check_branch
          %264 = sbr.rel (%p262) target = $region16
        $region15: #{tpu_custom_call.1} parent=11 // pred_region
          _
        $region16: #{tpu_custom_call.1} parent=11 // pred_fallthru
          _
        // Predicated region
        $region17: #{tpu_custom_call.1} parent=11 // pred_check
          %p265 = pneg %p135
        $region18: #{tpu_custom_call.1} parent=11 // pred_check_branch
          %267 = sbr.rel (%p265) target = $region20
        $region19: #{tpu_custom_call.1} parent=11 // pred_region
          _
        $region20: #{tpu_custom_call.1} parent=11 // pred_fallthru
          _
        // Predicated region
        $region21: #{tpu_custom_call.1} parent=11 // pred_check
          %p268 = pneg %p156
        $region22: #{tpu_custom_call.1} parent=11 // pred_check_branch
          %270 = sbr.rel (%p268) target = $region24
        $region23: #{tpu_custom_call.1} parent=11 // pred_region
          _
        $region24: #{tpu_custom_call.1} parent=11 // pred_fallthru
          _
        // Predicated region
        $region25: #{tpu_custom_call.1} parent=11 // pred_check
          %p271 = pneg %p177
        $region26: #{tpu_custom_call.1} parent=11 // pred_check_branch
          %273 = sbr.rel (%p271) target = $region28
        $region27: #{tpu_custom_call.1} parent=11 // pred_region
          _
        $region28: #{tpu_custom_call.1} parent=11 // pred_fallthru
          _
        // Predicated region
        $region29: #{tpu_custom_call.1} parent=11 // pred_check
          %p274 = pneg %p198
        $region30: #{tpu_custom_call.1} parent=11 // pred_check_branch
          %276 = sbr.rel (%p274) target = $region32
        $region31: #{tpu_custom_call.1} parent=11 // pred_region
          _
        $region32: #{tpu_custom_call.1} parent=11 // pred_fallthru
          _
        // Predicated region
        $region33: #{tpu_custom_call.1} parent=11 // pred_check
          %p277 = pneg %p219
        $region34: #{tpu_custom_call.1} parent=11 // pred_check_branch
          %279 = sbr.rel (%p277) target = $region36
        $region35: #{tpu_custom_call.1} parent=11 // pred_region
          _
        $region36: #{tpu_custom_call.1} parent=11 // pred_fallthru
          _
      $region12: #{tpu_custom_call.1} parent=5 // pred_fallthru
        _
      %p280 = scmp.lt.s32.totalorder %s23, 2
      // Predicated region
      $region37: #{tpu_custom_call.1} parent=5 // pred_check
        %p281 = pneg %p280
      $region38: #{tpu_custom_call.1} parent=5 // pred_check_branch
        %283 = sbr.rel (%p281) target = $region40
      $region39: #{tpu_custom_call.1} parent=5 // pred_region
        // Predicated region
        $region41: #{tpu_custom_call.1} parent=39 // pred_check
          %p284 = pneg %p57
        $region42: #{tpu_custom_call.1} parent=39 // pred_check_branch
          %286 = sbr.rel (%p284) target = $region44
        $region43: #{tpu_custom_call.1} parent=39 // pred_region
          %s287 = sand.u32 %s47, 1
          %s288 = scalar_lea.sflag [#allocation4], %s287
          %s289 = sand.u32 %s47, 1
          %s290 = smul.addr %s289, 8
          %s291 = scalar_lea.vmem [#allocation3], %s290
          %s293 = ssub.s32 128, 128
          %294 = vsyncadd %s288, %s293
          %s295 = smul.addr %s30, 2
          %s296 = sadd.s32 %s31, %s295
          %s297 = smul.addr %s296, 128
          %s298 = scalar_lea.hbm %s0, %s297
          %s300 = sshll.u32 %s291, 4
          %s301 = int_to_ptr.vmem [resolvable:$true] %s300
          %303 = dma.hbm_to_vmem [thread:$0]  %s298, 128, %s301, %s288
        $region44: #{tpu_custom_call.1} parent=39 // pred_fallthru
          _
        // Predicated region
        $region45: #{tpu_custom_call.1} parent=39 // pred_check
          %p304 = pneg %p87
        $region46: #{tpu_custom_call.1} parent=39 // pred_check_branch
          %306 = sbr.rel (%p304) target = $region48
        $region47: #{tpu_custom_call.1} parent=39 // pred_region
          %s307 = sand.u32 %s77, 1
          %s308 = scalar_lea.sflag [#allocation7], %s307
          %s309 = sand.u32 %s77, 1
          %s310 = smul.addr %s309, 8
          %s311 = scalar_lea.vmem [#allocation6], %s310
          %s312 = sadd.s32 %s31, 1
          %s314 = ssub.s32 128, 128
          %315 = vsyncadd %s308, %s314
          %s316 = smul.addr %s30, 2
          %s317 = sadd.s32 %s312, %s316
          %s318 = smul.addr %s317, 128
          %s319 = scalar_lea.hbm %s1, %s318
          %s321 = sshll.u32 %s311, 4
          %s322 = int_to_ptr.vmem [resolvable:$true] %s321
          %324 = dma.hbm_to_vmem [thread:$0]  %s319, 128, %s322, %s308
        $region48: #{tpu_custom_call.1} parent=39 // pred_fallthru
          _
      $region40: #{tpu_custom_call.1} parent=5 // pred_fallthru
        _
      %p325 = scmp.le.s32.totalorder 1, %s23
      %p326 = scmp.lt.s32.totalorder %s23, 3
      %p327 = pnand %p325, %p326
      %p328 = pneg %p327
      // Predicated region
      $region49: #{tpu_custom_call.1} parent=5 // pred_check
        _
      $region50: #{tpu_custom_call.1} parent=5 // pred_check_branch
        %330 = sbr.rel (%p327) target = $region52
      $region51: #{tpu_custom_call.1} parent=5 // pred_region
        %s331 = ssub.s32 %s23, 1
        %s332 = sand.u32 %s50, 1
        %s333 = scalar_lea.sflag [#allocation4], %s332
        %s334 = sand.u32 %s50, 1
        %s335 = smul.addr %s334, 8
        %s336 = scalar_lea.vmem [#allocation3], %s335
        // Predicated region
        $region53: #{tpu_custom_call.1} parent=51 // pred_check
          %p337 = pneg %p63
        $region54: #{tpu_custom_call.1} parent=51 // pred_check_branch
          %339 = sbr.rel (%p337) target = $region56
        $region55: #{tpu_custom_call.1} parent=51 // pred_region
          %340 = dma.done %s333, 128
        $region56: #{tpu_custom_call.1} parent=51 // pred_fallthru
          _
        %s341 = sand.u32 %s80, 1
        %s342 = scalar_lea.sflag [#allocation7], %s341
        %s343 = sand.u32 %s80, 1
        %s344 = smul.addr %s343, 8
        %s345 = scalar_lea.vmem [#allocation6], %s344
        // Predicated region
        $region57: #{tpu_custom_call.1} parent=51 // pred_check
          %p346 = pneg %p93
        $region58: #{tpu_custom_call.1} parent=51 // pred_check_branch
          %348 = sbr.rel (%p346) target = $region60
        $region59: #{tpu_custom_call.1} parent=51 // pred_region
          %349 = dma.done %s342, 128
        $region60: #{tpu_custom_call.1} parent=51 // pred_fallthru
          _
        %s350 = sand.u32 %s50, 1
        %s351 = scalar_lea.sflag [#allocation4], %s350
        %s352 = sand.u32 %s50, 1
        %s353 = smul.addr %s352, 8
        %s354 = scalar_lea.vmem [#allocation3], %s353
        %p355 = pneg %p63
        %p356 = pneg %p60
        %s357 = sand.u32 %s80, 1
        %s358 = scalar_lea.sflag [#allocation7], %s357
        %s359 = sand.u32 %s80, 1
        %s360 = smul.addr %s359, 8
        %s361 = scalar_lea.vmem [#allocation6], %s360
        %p362 = pneg %p93
        %p363 = pneg %p90
        %p364 = pneg %p114
        %p365 = pneg %p111
        %p366 = pneg %p135
        %p367 = pneg %p132
        %p368 = pneg %p156
        %p369 = pneg %p153
        %p370 = pneg %p177
        %p371 = pneg %p174
        %p372 = pneg %p198
        %p373 = pneg %p195
        %p374 = pneg %p219
        %p375 = pneg %p216
        %p376 = pneg %p247
        %p377 = pneg %p244
        %s378 = sand.u32 %s234, 1
        %s379 = scalar_lea.sflag [#allocation5], %s378
        %s380 = sand.u32 %s234, 1
        %s381 = smul.addr %s380, 4
        %s382 = scalar_lea.vmem [#allocation8], %s381
        %s383 = sadd.s32 %s33, 1
        %s384 = smul.u32 %s33, 128
        %s385 = ssub.s32 2, %s384
        %v386 = vlaneseq
        %v387 = vand.u32 %v386, 127
        %v388 = vadd.s32 %v387, 128
        %v389 = vld [vmem:[%s2] sm:$0xf]
        %v390 = vld [vmem:[%s3] sm:$0xf]
        %s391 = ssub.s32 10, %s384
        %v392 = vld [vmem:[%s336] sm:$0xf]
        %394 = vset.pattern.permute.xlu0 0
        %395 = vperm.xlu0 %394, %v389
        %v396 = vpop.permute.xlu0 %395
        %v398 = vmul.f32 %v392, %v396
        %400 = vset.pattern.permute.xlu0 0
        %401 = vperm.xlu0 %400, %v390
        %v402 = vpop.permute.xlu0 %401
        %v404 = vadd.f32 %v398, %v402
        %v405 = vmax.f32 %v404, 0.0
        %v406 = vstv %s385
        %vm407 = vcmp.ge.s32.totalorder %v387, %v406
        %v408 = vstv %s391
        %vm409 = vcmp.lt.s32.totalorder %v387, %v408
        %vm410 = vmand %vm407, %vm409
        %v411 = vsel %vm410, 1, 0
        %vm412 = vcmp.eq.s32.totalorder %v411, 1
        %v413 = vsel %vm412, %v405, 0.0
        %414 = vst [vmem:[#allocation2] sm:$0xf] %v413
        %v415 = vld [vmem:[%s345] sm:$0xf]
        %v416 = vmul.f32 %v415, %v396
        %v417 = vadd.f32 %v416, %v402
        %v418 = vmax.f32 %v417, 0.0
        %vm419 = vcmp.ge.s32.totalorder %v388, %v406
        %vm420 = vcmp.lt.s32.totalorder %v388, %v408
        %vm421 = vmand %vm419, %vm420
        %v422 = vsel %vm421, 1, 0
        %vm423 = vcmp.eq.s32.totalorder %v422, 1
        %v424 = vsel %vm423, %v418, 0.0
        %vm425 = vcmask 19456
        %426 = vst.msk [vmem:[#allocation2 + $0x8] sm:$0xf] %vm425, %v424
        %v427 = vld [vmem:[%s2 + $0x4] sm:$0xf]
        %v428 = vld [vmem:[%s3 + $0x4] sm:$0xf]
        %v429 = vld [vmem:[%s336 + $0x4] sm:$0xf]
        %431 = vset.pattern.permute.xlu0 0
        %432 = vperm.xlu0 %431, %v427
        %v433 = vpop.permute.xlu0 %432
        %v435 = vmul.f32 %v429, %v433
        %437 = vset.pattern.permute.xlu0 0
        %438 = vperm.xlu0 %437, %v428
        %v439 = vpop.permute.xlu0 %438
        %v441 = vadd.f32 %v435, %v439
        %v442 = vmax.f32 %v441, 0.0
        %v443 = vsel %vm412, %v442, 0.0
        %v445 = vrot.slane %v443, 4
        %447 = vst [vmem:[#allocation2] sm:$0xf0] %v445
        %v448 = vld [vmem:[%s345 + $0x4] sm:$0xf]
        %v449 = vmul.f32 %v448, %v433
        %v450 = vadd.f32 %v449, %v439
        %v451 = vmax.f32 %v450, 0.0
        %v452 = vsel %vm423, %v451, 0.0
        %v454 = vrot.slane %v452, 4
        %vm456 = vcmask 23556
        %457 = vst.msk [vmem:[#allocation2 + $0x8] sm:$0xf0] %vm456, %v454
        %v458 = vld [vmem:[#allocation2] sm:$0xf0]
        %v459 = vld [vmem:[#allocation2 + $0x8] sm:$0xf0]
        %v460 = vld [vmem:[%s4] sm:$0xf]
        %v461 = vld [vmem:[#allocation2] sm:$0xf]
        %v462 = vld [vmem:[#allocation2 + $0x8] sm:$0xf]
        %s463 = scalar_lea.vmem %s4, 4
        %v464 = vld [vmem:[%s463] sm:$0xf]
        %467 = vrot.lane.b32.xlu0 %v461, 127
        %v468 = vpop.permute.xlu0 %467
        %469 = vrot.lane.b32.xlu0 %v462, 127
        %v470 = vpop.permute.xlu0 %469
        %vm471 = vcmask 1039360
        %v472 = vsel %vm471, %v468, %v470
        %vm473 = vcmask 31744
        %v475 = vsel %vm473, %v464, 0
        %vm477 = vcmask 1043456
        %v478 = vsel %vm477, %v472, 0
        %v480 = vsel %vm477, %v470, 0
        %482 = vmatprep.subr.mxu0 0.0
        %483 = vmatpush1.msra.mxu0 0.0
        %484 = vmatprep.subr.mxu0 0.0
        %485 = vmatpush1.msra.mxu0 0.0
        %486 = vmatprep.subr.mxu0 0.0
        %487 = vmatpush1.msra.mxu0 0.0
        %488 = vmatprep.subr.mxu0 0.0
        %489 = vmatpush1.msra.mxu0 0.0
        %490 = vmatprep.subr.mxu0 0.0
        %491 = vmatpush1.msra.mxu0 0.0
        %492 = vmatprep.subr.mxu0 0.0
        %493 = vmatpush1.msra.mxu0 0.0
        %494 = vmatprep.subr.mxu0 0.0
        %495 = vmatpush1.msra.mxu0 0.0
        %496 = vmatprep.subr.mxu0 0.0
        %497 = vmatpush1.msra.mxu0 0.0
        %498 = vmatprep.subr.mxu0 0.0
        %499 = vmatpush1.msra.mxu0 0.0
        %500 = vmatprep.subr.mxu0 0.0
        %501 = vmatpush1.msra.mxu0 0.0
        %502 = vmatprep.subr.mxu0 0.0
        %503 = vmatpush1.msra.mxu0 0.0
        %504 = vmatprep.subr.mxu0 0.0
        %505 = vmatpush1.msra.mxu0 0.0
        %506 = vmatprep.subr.mxu0 0.0
        %507 = vmatpush1.msra.mxu0 0.0
        %508 = vmatprep.subr.mxu0 0.0
        %509 = vmatpush1.msra.mxu0 0.0
        %510 = vmatprep.subr.mxu0 0.0
        %511 = vmatpush1.msra.mxu0 0.0
        %512 = vmatprep.subr.mxu0 %v480
        %513 = vmatpush1.msra.mxu0 %v478
        %514 = vmatprep.subr.mxu0 0.0
        %515 = vmatpush2.msra.mxu0 0.0
        %516 = vmatprep.subr.mxu0 0.0
        %517 = vmatpush2.msra.mxu0 0.0
        %518 = vmatprep.subr.mxu0 0.0
        %519 = vmatpush2.msra.mxu0 0.0
        %520 = vmatprep.subr.mxu0 0.0
        %521 = vmatpush2.msra.mxu0 0.0
        %522 = vmatprep.subr.mxu0 0.0
        %523 = vmatpush2.msra.mxu0 0.0
        %524 = vmatprep.subr.mxu0 0.0
        %525 = vmatpush2.msra.mxu0 0.0
        %526 = vmatprep.subr.mxu0 0.0
        %527 = vmatpush2.msra.mxu0 0.0
        %528 = vmatprep.subr.mxu0 0.0
        %529 = vmatpush2.msra.mxu0 0.0
        %530 = vmatprep.subr.mxu0 0.0
        %531 = vmatpush2.msra.mxu0 0.0
        %532 = vmatprep.subr.mxu0 0.0
        %533 = vmatpush2.msra.mxu0 0.0
        %534 = vmatprep.subr.mxu0 0.0
        %535 = vmatpush2.msra.mxu0 0.0
        %536 = vmatprep.subr.mxu0 0.0
        %537 = vmatpush2.msra.mxu0 0.0
        %538 = vmatprep.subr.mxu0 0.0
        %539 = vmatpush2.msra.mxu0 0.0
        %540 = vmatprep.subr.mxu0 0.0
        %541 = vmatpush2.msra.mxu0 0.0
        %542 = vmatprep.subr.mxu0 0.0
        %543 = vmatpush2.msra.mxu0 0.0
        %544 = vmatprep.subr.mxu0 0.0
        %545 = vmatpush2.msra.mxu0 0.0
        %546 = vmatprep.mubr.f32.mxu0 0.0
        %547 = vmatmul.mubr.f32.gmra.mxu0 %v475
        %v548 = vpop.f32.mrf.mxu0
        %v549 = vadd.f32 0.0, %v548
        %v550 = vpop.f32.mrf.mxu0
        %v551 = vadd.f32 0.0, %v550
        %552 = vdwg.mxu0
        %v555 = vrot.slane %v458, 4
        %v556 = vrot.slane %v459, 4
        %v558 = vsel %vm473, %v460, 0
        %v560 = vsel %vm477, %v555, 0
        %v562 = vsel %vm477, %v556, 0
        %564 = vmatprep.subr.mxu0 0.0
        %565 = vmatpush1.msra.mxu0 0.0
        %566 = vmatprep.subr.mxu0 0.0
        %567 = vmatpush1.msra.mxu0 0.0
        %568 = vmatprep.subr.mxu0 0.0
        %569 = vmatpush1.msra.mxu0 0.0
        %570 = vmatprep.subr.mxu0 0.0
        %571 = vmatpush1.msra.mxu0 0.0
        %572 = vmatprep.subr.mxu0 0.0
        %573 = vmatpush1.msra.mxu0 0.0
        %574 = vmatprep.subr.mxu0 0.0
        %575 = vmatpush1.msra.mxu0 0.0
        %576 = vmatprep.subr.mxu0 0.0
        %577 = vmatpush1.msra.mxu0 0.0
        %578 = vmatprep.subr.mxu0 0.0
        %579 = vmatpush1.msra.mxu0 0.0
        %580 = vmatprep.subr.mxu0 0.0
        %581 = vmatpush1.msra.mxu0 0.0
        %582 = vmatprep.subr.mxu0 0.0
        %583 = vmatpush1.msra.mxu0 0.0
        %584 = vmatprep.subr.mxu0 0.0
        %585 = vmatpush1.msra.mxu0 0.0
        %586 = vmatprep.subr.mxu0 0.0
        %587 = vmatpush1.msra.mxu0 0.0
        %588 = vmatprep.subr.mxu0 0.0
        %589 = vmatpush1.msra.mxu0 0.0
        %590 = vmatprep.subr.mxu0 0.0
        %591 = vmatpush1.msra.mxu0 0.0
        %592 = vmatprep.subr.mxu0 0.0
        %593 = vmatpush1.msra.mxu0 0.0
        %594 = vmatprep.subr.mxu0 %v562
        %595 = vmatpush1.msra.mxu0 %v560
        %596 = vmatprep.subr.mxu0 0.0
        %597 = vmatpush2.msra.mxu0 0.0
        %598 = vmatprep.subr.mxu0 0.0
        %599 = vmatpush2.msra.mxu0 0.0
        %600 = vmatprep.subr.mxu0 0.0
        %601 = vmatpush2.msra.mxu0 0.0
        %602 = vmatprep.subr.mxu0 0.0
        %603 = vmatpush2.msra.mxu0 0.0
        %604 = vmatprep.subr.mxu0 0.0
        %605 = vmatpush2.msra.mxu0 0.0
        %606 = vmatprep.subr.mxu0 0.0
        %607 = vmatpush2.msra.mxu0 0.0
        %608 = vmatprep.subr.mxu0 0.0
        %609 = vmatpush2.msra.mxu0 0.0
        %610 = vmatprep.subr.mxu0 0.0
        %611 = vmatpush2.msra.mxu0 0.0
        %612 = vmatprep.subr.mxu0 0.0
        %613 = vmatpush2.msra.mxu0 0.0
        %614 = vmatprep.subr.mxu0 0.0
        %615 = vmatpush2.msra.mxu0 0.0
        %616 = vmatprep.subr.mxu0 0.0
        %617 = vmatpush2.msra.mxu0 0.0
        %618 = vmatprep.subr.mxu0 0.0
        %619 = vmatpush2.msra.mxu0 0.0
        %620 = vmatprep.subr.mxu0 0.0
        %621 = vmatpush2.msra.mxu0 0.0
        %622 = vmatprep.subr.mxu0 0.0
        %623 = vmatpush2.msra.mxu0 0.0
        %624 = vmatprep.subr.mxu0 0.0
        %625 = vmatpush2.msra.mxu0 0.0
        %626 = vmatprep.subr.mxu0 0.0
        %627 = vmatpush2.msra.mxu0 0.0
        %628 = vmatprep.mubr.f32.mxu0 0.0
        %629 = vmatmul.mubr.f32.gmra.mxu0 %v558
        %v630 = vpop.f32.mrf.mxu0
        %v631 = vadd.f32 %v549, %v630
        %v632 = vpop.f32.mrf.mxu0
        %v633 = vadd.f32 %v551, %v632
        %634 = vdwg.mxu0
        %s635 = scalar_lea.vmem %s4, 8
        %v636 = vld [vmem:[%s635] sm:$0xf]
        %637 = vrot.lane.b32.xlu0 %v555, 127
        %v638 = vpop.permute.xlu0 %637
        %639 = vrot.lane.b32.xlu0 %v556, 127
        %v640 = vpop.permute.xlu0 %639
        %v641 = vsel %vm471, %v638, %v640
        %v643 = vsel %vm473, %v636, 0
        %v645 = vsel %vm477, %v641, 0
        %v647 = vsel %vm477, %v640, 0
        %649 = vmatprep.subr.mxu0 0.0
        %650 = vmatpush1.msra.mxu0 0.0
        %651 = vmatprep.subr.mxu0 0.0
        %652 = vmatpush1.msra.mxu0 0.0
        %653 = vmatprep.subr.mxu0 0.0
        %654 = vmatpush1.msra.mxu0 0.0
        %655 = vmatprep.subr.mxu0 0.0
        %656 = vmatpush1.msra.mxu0 0.0
        %657 = vmatprep.subr.mxu0 0.0
        %658 = vmatpush1.msra.mxu0 0.0
        %659 = vmatprep.subr.mxu0 0.0
        %660 = vmatpush1.msra.mxu0 0.0
        %661 = vmatprep.subr.mxu0 0.0
        %662 = vmatpush1.msra.mxu0 0.0
        %663 = vmatprep.subr.mxu0 0.0
        %664 = vmatpush1.msra.mxu0 0.0
        %665 = vmatprep.subr.mxu0 0.0
        %666 = vmatpush1.msra.mxu0 0.0
        %667 = vmatprep.subr.mxu0 0.0
        %668 = vmatpush1.msra.mxu0 0.0
        %669 = vmatprep.subr.mxu0 0.0
        %670 = vmatpush1.msra.mxu0 0.0
        %671 = vmatprep.subr.mxu0 0.0
        %672 = vmatpush1.msra.mxu0 0.0
        %673 = vmatprep.subr.mxu0 0.0
        %674 = vmatpush1.msra.mxu0 0.0
        %675 = vmatprep.subr.mxu0 0.0
        %676 = vmatpush1.msra.mxu0 0.0
        %677 = vmatprep.subr.mxu0 0.0
        %678 = vmatpush1.msra.mxu0 0.0
        %679 = vmatprep.subr.mxu0 %v647
        %680 = vmatpush1.msra.mxu0 %v645
        %681 = vmatprep.subr.mxu0 0.0
        %682 = vmatpush2.msra.mxu0 0.0
        %683 = vmatprep.subr.mxu0 0.0
        %684 = vmatpush2.msra.mxu0 0.0
        %685 = vmatprep.subr.mxu0 0.0
        %686 = vmatpush2.msra.mxu0 0.0
        %687 = vmatprep.subr.mxu0 0.0
        %688 = vmatpush2.msra.mxu0 0.0
        %689 = vmatprep.subr.mxu0 0.0
        %690 = vmatpush2.msra.mxu0 0.0
        %691 = vmatprep.subr.mxu0 0.0
        %692 = vmatpush2.msra.mxu0 0.0
        %693 = vmatprep.subr.mxu0 0.0
        %694 = vmatpush2.msra.mxu0 0.0
        %695 = vmatprep.subr.mxu0 0.0
        %696 = vmatpush2.msra.mxu0 0.0
        %697 = vmatprep.subr.mxu0 0.0
        %698 = vmatpush2.msra.mxu0 0.0
        %699 = vmatprep.subr.mxu0 0.0
        %700 = vmatpush2.msra.mxu0 0.0
        %701 = vmatprep.subr.mxu0 0.0
        %702 = vmatpush2.msra.mxu0 0.0
        %703 = vmatprep.subr.mxu0 0.0
        %704 = vmatpush2.msra.mxu0 0.0
        %705 = vmatprep.subr.mxu0 0.0
        %706 = vmatpush2.msra.mxu0 0.0
        %707 = vmatprep.subr.mxu0 0.0
        %708 = vmatpush2.msra.mxu0 0.0
        %709 = vmatprep.subr.mxu0 0.0
        %710 = vmatpush2.msra.mxu0 0.0
        %711 = vmatprep.subr.mxu0 0.0
        %712 = vmatpush2.msra.mxu0 0.0
        %713 = vmatprep.mubr.f32.mxu0 0.0
        %714 = vmatmul.mubr.f32.gmra.mxu0 %v643
        %v715 = vpop.f32.mrf.mxu0
        %v716 = vadd.f32 0.0, %v715
        %v717 = vpop.f32.mrf.mxu0
        %v718 = vadd.f32 0.0, %v717
        %719 = vdwg.mxu0
        %v720 = vadd.f32 %v631, %v716
        %v721 = vadd.f32 %v633, %v718
        %v722 = vld [vmem:[%s5] sm:$0xf]
        %724 = vset.pattern.permute.xlu0 0
        %725 = vperm.xlu0 %724, %v722
        %v726 = vpop.permute.xlu0 %725
        %v728 = vadd.f32 %v720, %v726
        %v729 = vadd.f32 %v721, %v726
        %s730 = ssub.s32 1, %s384
        %s731 = ssub.s32 9, %s384
        %v732 = vstv %s730
        %vm733 = vcmp.ge.s32.totalorder %v387, %v732
        %vm734 = vcmp.ge.s32.totalorder %v388, %v732
        %v735 = vstv %s731
        %vm736 = vcmp.lt.s32.totalorder %v387, %v735
        %vm737 = vcmp.lt.s32.totalorder %v388, %v735
        %vm738 = vmand %vm733, %vm736
        %vm739 = vmand %vm734, %vm737
        %v740 = vmax.f32 %v728, 0.0
        %v741 = vmax.f32 %v729, 0.0
        %v742 = vsel %vm738, 1, 0
        %v743 = vsel %vm739, 1, 0
        %vm744 = vcmp.eq.s32.totalorder %v742, 1
        %vm745 = vcmp.eq.s32.totalorder %v743, 1
        %v746 = vsel %vm744, %v740, 0.0
        %v747 = vsel %vm745, %v741, 0.0
        %v748 = vld [vmem:[%s6] sm:$0xf]
        %s749 = scalar_lea.vmem %s6, 4
        %v750 = vld [vmem:[%s749] sm:$0xf]
        %753 = vrot.lane.b32.xlu0 %v746, 127
        %v754 = vpop.permute.xlu0 %753
        %755 = vrot.lane.b32.xlu0 %v747, 127
        %v756 = vpop.permute.xlu0 %755
        %v757 = vsel %vm471, %v754, %v756
        %v759 = vsel %vm473, %v750, 0
        %v761 = vsel %vm477, %v757, 0
        %763 = vmatprep.subr.mxu0 0.0
        %764 = vmatpush1.msra.mxu0 0.0
        %765 = vmatprep.subr.mxu0 0.0
        %766 = vmatpush1.msra.mxu0 0.0
        %767 = vmatprep.subr.mxu0 0.0
        %768 = vmatpush1.msra.mxu0 0.0
        %769 = vmatprep.subr.mxu0 0.0
        %770 = vmatpush1.msra.mxu0 0.0
        %771 = vmatprep.subr.mxu0 0.0
        %772 = vmatpush1.msra.mxu0 0.0
        %773 = vmatprep.subr.mxu0 0.0
        %774 = vmatpush1.msra.mxu0 0.0
        %775 = vmatprep.subr.mxu0 0.0
        %776 = vmatpush1.msra.mxu0 0.0
        %777 = vmatprep.subr.mxu0 0.0
        %778 = vmatpush1.msra.mxu0 0.0
        %779 = vmatprep.subr.mxu0 0.0
        %780 = vmatpush1.msra.mxu0 0.0
        %781 = vmatprep.subr.mxu0 0.0
        %782 = vmatpush1.msra.mxu0 0.0
        %783 = vmatprep.subr.mxu0 0.0
        %784 = vmatpush1.msra.mxu0 0.0
        %785 = vmatprep.subr.mxu0 0.0
        %786 = vmatpush1.msra.mxu0 0.0
        %787 = vmatprep.subr.mxu0 0.0
        %788 = vmatpush1.msra.mxu0 0.0
        %789 = vmatprep.subr.mxu0 0.0
        %790 = vmatpush1.msra.mxu0 0.0
        %791 = vmatprep.subr.mxu0 0.0
        %792 = vmatpush1.msra.mxu0 0.0
        %793 = vmatprep.subr.mxu0 0.0
        %794 = vmatpush1.msra.mxu0 %v761
        %795 = vmatprep.subr.mxu0 0.0
        %796 = vmatpush2.msra.mxu0 0.0
        %797 = vmatprep.subr.mxu0 0.0
        %798 = vmatpush2.msra.mxu0 0.0
        %799 = vmatprep.subr.mxu0 0.0
        %800 = vmatpush2.msra.mxu0 0.0
        %801 = vmatprep.subr.mxu0 0.0
        %802 = vmatpush2.msra.mxu0 0.0
        %803 = vmatprep.subr.mxu0 0.0
        %804 = vmatpush2.msra.mxu0 0.0
        %805 = vmatprep.subr.mxu0 0.0
        %806 = vmatpush2.msra.mxu0 0.0
        %807 = vmatprep.subr.mxu0 0.0
        %808 = vmatpush2.msra.mxu0 0.0
        %809 = vmatprep.subr.mxu0 0.0
        %810 = vmatpush2.msra.mxu0 0.0
        %811 = vmatprep.subr.mxu0 0.0
        %812 = vmatpush2.msra.mxu0 0.0
        %813 = vmatprep.subr.mxu0 0.0
        %814 = vmatpush2.msra.mxu0 0.0
        %815 = vmatprep.subr.mxu0 0.0
        %816 = vmatpush2.msra.mxu0 0.0
        %817 = vmatprep.subr.mxu0 0.0
        %818 = vmatpush2.msra.mxu0 0.0
        %819 = vmatprep.subr.mxu0 0.0
        %820 = vmatpush2.msra.mxu0 0.0
        %821 = vmatprep.subr.mxu0 0.0
        %822 = vmatpush2.msra.mxu0 0.0
        %823 = vmatprep.subr.mxu0 0.0
        %824 = vmatpush2.msra.mxu0 0.0
        %825 = vmatprep.subr.mxu0 0.0
        %826 = vmatpush2.msra.mxu0 0.0
        %827 = vmatprep.mubr.f32.mxu0 0.0
        %828 = vmatmul.mubr.f32.gmra.mxu0 %v759
        %v829 = vpop.f32.mrf.mxu0
        %v830 = vadd.f32 0.0, %v829
        %v831 = vpop.f32.mrf.mxu0
        %832 = vdwg.mxu0
        %v834 = vsel %vm473, %v748, 0
        %v836 = vsel %vm477, %v746, 0
        %838 = vmatprep.subr.mxu0 0.0
        %839 = vmatpush1.msra.mxu0 0.0
        %840 = vmatprep.subr.mxu0 0.0
        %841 = vmatpush1.msra.mxu0 0.0
        %842 = vmatprep.subr.mxu0 0.0
        %843 = vmatpush1.msra.mxu0 0.0
        %844 = vmatprep.subr.mxu0 0.0
        %845 = vmatpush1.msra.mxu0 0.0
        %846 = vmatprep.subr.mxu0 0.0
        %847 = vmatpush1.msra.mxu0 0.0
        %848 = vmatprep.subr.mxu0 0.0
        %849 = vmatpush1.msra.mxu0 0.0
        %850 = vmatprep.subr.mxu0 0.0
        %851 = vmatpush1.msra.mxu0 0.0
        %852 = vmatprep.subr.mxu0 0.0
        %853 = vmatpush1.msra.mxu0 0.0
        %854 = vmatprep.subr.mxu0 0.0
        %855 = vmatpush1.msra.mxu0 0.0
        %856 = vmatprep.subr.mxu0 0.0
        %857 = vmatpush1.msra.mxu0 0.0
        %858 = vmatprep.subr.mxu0 0.0
        %859 = vmatpush1.msra.mxu0 0.0
        %860 = vmatprep.subr.mxu0 0.0
        %861 = vmatpush1.msra.mxu0 0.0
        %862 = vmatprep.subr.mxu0 0.0
        %863 = vmatpush1.msra.mxu0 0.0
        %864 = vmatprep.subr.mxu0 0.0
        %865 = vmatpush1.msra.mxu0 0.0
        %866 = vmatprep.subr.mxu0 0.0
        %867 = vmatpush1.msra.mxu0 0.0
        %868 = vmatprep.subr.mxu0 0.0
        %869 = vmatpush1.msra.mxu0 %v836
        %870 = vmatprep.subr.mxu0 0.0
        %871 = vmatpush2.msra.mxu0 0.0
        %872 = vmatprep.subr.mxu0 0.0
        %873 = vmatpush2.msra.mxu0 0.0
        %874 = vmatprep.subr.mxu0 0.0
        %875 = vmatpush2.msra.mxu0 0.0
        %876 = vmatprep.subr.mxu0 0.0
        %877 = vmatpush2.msra.mxu0 0.0
        %878 = vmatprep.subr.mxu0 0.0
        %879 = vmatpush2.msra.mxu0 0.0
        %880 = vmatprep.subr.mxu0 0.0
        %881 = vmatpush2.msra.mxu0 0.0
        %882 = vmatprep.subr.mxu0 0.0
        %883 = vmatpush2.msra.mxu0 0.0
        %884 = vmatprep.subr.mxu0 0.0
        %885 = vmatpush2.msra.mxu0 0.0
        %886 = vmatprep.subr.mxu0 0.0
        %887 = vmatpush2.msra.mxu0 0.0
        %888 = vmatprep.subr.mxu0 0.0
        %889 = vmatpush2.msra.mxu0 0.0
        %890 = vmatprep.subr.mxu0 0.0
        %891 = vmatpush2.msra.mxu0 0.0
        %892 = vmatprep.subr.mxu0 0.0
        %893 = vmatpush2.msra.mxu0 0.0
        %894 = vmatprep.subr.mxu0 0.0
        %895 = vmatpush2.msra.mxu0 0.0
        %896 = vmatprep.subr.mxu0 0.0
        %897 = vmatpush2.msra.mxu0 0.0
        %898 = vmatprep.subr.mxu0 0.0
        %899 = vmatpush2.msra.mxu0 0.0
        %900 = vmatprep.subr.mxu0 0.0
        %901 = vmatpush2.msra.mxu0 0.0
        %902 = vmatprep.mubr.f32.mxu0 0.0
        %903 = vmatmul.mubr.f32.gmra.mxu0 %v834
        %v904 = vpop.f32.mrf.mxu0
        %v905 = vadd.f32 %v830, %v904
        %v906 = vpop.f32.mrf.mxu0
        %907 = vdwg.mxu0
        %s908 = scalar_lea.vmem %s6, 8
        %v909 = vld [vmem:[%s908] sm:$0xf]
        %910 = vrot.lane.b32.xlu0 %v746, 126
        %v911 = vpop.permute.xlu0 %910
        %912 = vrot.lane.b32.xlu0 %v747, 126
        %v913 = vpop.permute.xlu0 %912
        %vm914 = vcmask 1031168
        %v915 = vsel %vm914, %v911, %v913
        %v917 = vsel %vm473, %v909, 0
        %v919 = vsel %vm477, %v915, 0
        %921 = vmatprep.subr.mxu0 0.0
        %922 = vmatpush1.msra.mxu0 0.0
        %923 = vmatprep.subr.mxu0 0.0
        %924 = vmatpush1.msra.mxu0 0.0
        %925 = vmatprep.subr.mxu0 0.0
        %926 = vmatpush1.msra.mxu0 0.0
        %927 = vmatprep.subr.mxu0 0.0
        %928 = vmatpush1.msra.mxu0 0.0
        %929 = vmatprep.subr.mxu0 0.0
        %930 = vmatpush1.msra.mxu0 0.0
        %931 = vmatprep.subr.mxu0 0.0
        %932 = vmatpush1.msra.mxu0 0.0
        %933 = vmatprep.subr.mxu0 0.0
        %934 = vmatpush1.msra.mxu0 0.0
        %935 = vmatprep.subr.mxu0 0.0
        %936 = vmatpush1.msra.mxu0 0.0
        %937 = vmatprep.subr.mxu0 0.0
        %938 = vmatpush1.msra.mxu0 0.0
        %939 = vmatprep.subr.mxu0 0.0
        %940 = vmatpush1.msra.mxu0 0.0
        %941 = vmatprep.subr.mxu0 0.0
        %942 = vmatpush1.msra.mxu0 0.0
        %943 = vmatprep.subr.mxu0 0.0
        %944 = vmatpush1.msra.mxu0 0.0
        %945 = vmatprep.subr.mxu0 0.0
        %946 = vmatpush1.msra.mxu0 0.0
        %947 = vmatprep.subr.mxu0 0.0
        %948 = vmatpush1.msra.mxu0 0.0
        %949 = vmatprep.subr.mxu0 0.0
        %950 = vmatpush1.msra.mxu0 0.0
        %951 = vmatprep.subr.mxu0 0.0
        %952 = vmatpush1.msra.mxu0 %v919
        %953 = vmatprep.subr.mxu0 0.0
        %954 = vmatpush2.msra.mxu0 0.0
        %955 = vmatprep.subr.mxu0 0.0
        %956 = vmatpush2.msra.mxu0 0.0
        %957 = vmatprep.subr.mxu0 0.0
        %958 = vmatpush2.msra.mxu0 0.0
        %959 = vmatprep.subr.mxu0 0.0
        %960 = vmatpush2.msra.mxu0 0.0
        %961 = vmatprep.subr.mxu0 0.0
        %962 = vmatpush2.msra.mxu0 0.0
        %963 = vmatprep.subr.mxu0 0.0
        %964 = vmatpush2.msra.mxu0 0.0
        %965 = vmatprep.subr.mxu0 0.0
        %966 = vmatpush2.msra.mxu0 0.0
        %967 = vmatprep.subr.mxu0 0.0
        %968 = vmatpush2.msra.mxu0 0.0
        %969 = vmatprep.subr.mxu0 0.0
        %970 = vmatpush2.msra.mxu0 0.0
        %971 = vmatprep.subr.mxu0 0.0
        %972 = vmatpush2.msra.mxu0 0.0
        %973 = vmatprep.subr.mxu0 0.0
        %974 = vmatpush2.msra.mxu0 0.0
        %975 = vmatprep.subr.mxu0 0.0
        %976 = vmatpush2.msra.mxu0 0.0
        %977 = vmatprep.subr.mxu0 0.0
        %978 = vmatpush2.msra.mxu0 0.0
        %979 = vmatprep.subr.mxu0 0.0
        %980 = vmatpush2.msra.mxu0 0.0
        %981 = vmatprep.subr.mxu0 0.0
        %982 = vmatpush2.msra.mxu0 0.0
        %983 = vmatprep.subr.mxu0 0.0
        %984 = vmatpush2.msra.mxu0 0.0
        %985 = vmatprep.mubr.f32.mxu0 0.0
        %986 = vmatmul.mubr.f32.gmra.mxu0 %v917
        %v987 = vpop.f32.mrf.mxu0
        %v988 = vadd.f32 0.0, %v987
        %v989 = vpop.f32.mrf.mxu0
        %990 = vdwg.mxu0
        %v991 = vadd.f32 %v905, %v988
        %v992 = vld [vmem:[%s7] sm:$0xf]
        %994 = vset.pattern.permute.xlu0 0
        %995 = vperm.xlu0 %994, %v992
        %v996 = vpop.permute.xlu0 %995
        %v998 = vadd.f32 %v991, %v996
        %v999 = vld [vmem:[%s336] sm:$0xf]
        %v1000 = vld [vmem:[%s336 + $0x4] sm:$0xf]
        %v1001 = vmax.f32 %v999, %v1000
        %1003 = vrot.lane.b32.xlu0 %v1001, 126
        %v1004 = vpop.permute.xlu0 %1003
        %v1006 = vadd.f32 %v998, %v1004
        %vm1007 = vcmask 1027072
        %1008 = vst.msk [vmem:[%s382] sm:$0xf] %vm1007, %v1006
        %v1009 = vld [vmem:[%s345] sm:$0xf]
        %v1010 = vld [vmem:[%s345 + $0x4] sm:$0xf]
        %v1011 = vmax.f32 %v1009, %v1010
        %1013 = vrot.lane.b32.xlu0 %v1011, 126
        %v1014 = vpop.permute.xlu0 %1013
        %v1016 = vadd.f32 %v998, %v1014
        %vm1017 = vcmask 1044464
        %1018 = vst.msk [vmem:[%s382] sm:$0xf] %vm1017, %v1016
        %s1019 = sand.u32 %s234, 1
        %s1020 = scalar_lea.sflag [#allocation5], %s1019
        %s1021 = sand.u32 %s234, 1
        %s1022 = smul.addr %s1021, 4
        %s1023 = scalar_lea.vmem [#allocation8], %s1022
        // Predicated region
        $region61: #{tpu_custom_call.1} parent=51 // pred_check
          %p1024 = pneg %p244
        $region62: #{tpu_custom_call.1} parent=51 // pred_check_branch
          %1026 = sbr.rel (%p1024) target = $region64
        $region63: #{tpu_custom_call.1} parent=51 // pred_region
          %s1028 = ssub.s32 64, 64
          %1029 = vsyncadd %s1020, %s1028
          %s1030 = sadd.s32 %s33, %s32
          %s1031 = smul.addr %s1030, 64
          %s1032 = scalar_lea.hbm %s8, %s1031
          %s1034 = sshll.u32 %s1023, 4
          %s1035 = int_to_ptr.vmem [resolvable:$true] %s1034
          %1037 = dma.vmem_to_hbm [thread:$0]  %s1035, 64, %s1032, %s1020
        $region64: #{tpu_custom_call.1} parent=51 // pred_fallthru
          _
      $region52: #{tpu_custom_call.1} parent=5 // pred_fallthru
        _
      %p1038 = scmp.le.s32.totalorder 2, %s23
      // Predicated region
      $region65: #{tpu_custom_call.1} parent=5 // pred_check
        %p1039 = pneg %p1038
      $region66: #{tpu_custom_call.1} parent=5 // pred_check_branch
        %1041 = sbr.rel (%p1039) target = $region68
      $region67: #{tpu_custom_call.1} parent=5 // pred_region
        %s1042 = ssub.s32 %s23, 2
        // Predicated region
        $region69: #{tpu_custom_call.1} parent=67 // pred_check
          %p1043 = pneg %p250
        $region70: #{tpu_custom_call.1} parent=67 // pred_check_branch
          %1045 = sbr.rel (%p1043) target = $region72
        $region71: #{tpu_custom_call.1} parent=67 // pred_region
          %s1046 = sand.u32 %s235, 1
          %s1047 = scalar_lea.sflag [#allocation5], %s1046
          %s1048 = sand.u32 %s235, 1
          %s1049 = smul.addr %s1048, 4
          %s1050 = scalar_lea.vmem [#allocation8], %s1049
          %1051 = dma.done %s1047, 64
        $region72: #{tpu_custom_call.1} parent=67 // pred_fallthru
          _
      $region68: #{tpu_custom_call.1} parent=5 // pred_fallthru
        _
    $region6: #{tpu_custom_call.1} parent=1 // loop_footer
      %s27 = sadd.s32 1, %s23
    $region7: #{tpu_custom_call.1} parent=1 // loop_footer_branch
      %22 = sbr.rel target = $region3
    $region8: #{tpu_custom_call.1} parent=1 // loop_exit
      _
    %1052 = vsyncpa [#allocation4], 1
    %s1053 = scalar_lea.sflag [#allocation4], 1
    %1054 = vsyncpa %s1053, 1
    %1055 = vsyncpa [#allocation7], 1
    %s1056 = scalar_lea.sflag [#allocation7], 1
    %1057 = vsyncpa %s1056, 1
    %1058 = vsyncpa [#allocation5], 1
    %s1059 = scalar_lea.sflag [#allocation5], 1
    %1060 = vsyncpa %s1059, 1

</llo_original>
